<compile_context>
chip_gen: v7x
topology: tpu7x:2x2x1
jax: 0.10.0
libtpu: 0.0.40
codegen_flags: <defaults>
</compile_context>

<pallas_src>
import functools

import numpy as np
import jax
import jax.numpy as jnp
from jax import lax
from jax.experimental import pallas as pl
from jax.experimental.pallas import tpu as pltpu


def _round_up(v, m):
    return ((v + m - 1) // m) * m


# ----------------------------------------------------------------------------
# Fused Pallas kernel: grid = (layer, node-row-tile)
# ----------------------------------------------------------------------------
def _ocgin_kernel(one_plus_eps, multi_layer, x_ref, *rest):
    """Per grid step: aggregate one row-tile, run the 2-layer MLP, store h for
    the next layer (bf16 ping-pong scratch), and accumulate graph sum pooling
    into the layer's output block.

    multi_layer=True  -> rest = (adj, pool, w1, b1, w2, b2, out, h_scratch, agg_scratch)
    multi_layer=False -> rest = (pool, w1, b1, w2, b2, out, agg_scratch)
    """
    if multi_layer:
        (adj_ref, pool_ref, w1_ref, b1_ref, w2_ref, b2_ref,
         out_ref, h_ref, agg_ref) = rest
    else:
        (pool_ref, w1_ref, b1_ref, w2_ref, b2_ref,
         out_ref, agg_ref) = rest
        adj_ref = None
        h_ref = None

    layer = pl.program_id(0)
    tile = pl.program_id(1)
    num_layers = pl.num_programs(0)
    tm = x_ref.shape[0]          # node-row tile size
    if multi_layer:
        n_pad = h_ref.shape[0] // 2   # ping-pong halves

    # ---- aggregation into the f32 agg scratch --------------------------------
    @pl.when(layer == 0)
    def _():
        # first_h: plain MLP on the raw (zero-padded) node features.
        agg_ref[...] = x_ref[...].astype(jnp.float32)

    if multi_layer:
        @pl.when(layer > 0)
        def _():
            parity = lax.rem(layer, 2)
            r_base = (1 - parity) * n_pad            # read previous layer's half
            full_start = pl.multiple_of(r_base, 128)
            tile_start = pl.multiple_of(r_base + tile * tm, 128)
            h_full = h_ref[pl.ds(full_start, n_pad), :]                 # bf16 [N_pad, Hp]
            h_tile = h_ref[pl.ds(tile_start, tm), :].astype(jnp.float32)
            # GINConv aggregation: (1+eps)*h + A @ h  (bf16 MXU operands, f32 acc)
            agg_ref[...] = one_plus_eps * h_tile + jnp.dot(
                adj_ref[...], h_full, preferred_element_type=jnp.float32)

    # ---- 2-layer MLP: (Linear -> folded BN -> ReLU) x 2 ----------------------
    agg = agg_ref[...]
    t = jnp.dot(agg.astype(jnp.bfloat16), w1_ref[...],
                preferred_element_type=jnp.float32) + b1_ref[...]
    t = jnp.maximum(t, 0.0)
    t = jnp.dot(t.astype(jnp.bfloat16), w2_ref[...],
                preferred_element_type=jnp.float32) + b2_ref[...]
    t = jnp.maximum(t, 0.0)
    t_bf16 = t.astype(jnp.bfloat16)

    # ---- keep h resident for the next layer; skip the store on the last layer
    if multi_layer:
        @pl.when(layer < num_layers - 1)
        def _():
            parity = lax.rem(layer, 2)
            w_start = pl.multiple_of(parity * n_pad + tile * tm, 128)
            h_ref[pl.ds(w_start, tm), :] = t_bf16

    # ---- per-layer graph sum pooling, accumulated over row tiles -------------
    part = jnp.dot(pool_ref[...], t_bf16, preferred_element_type=jnp.float32)

    @pl.when(tile == 0)
    def _():
        out_ref[...] = part

    @pl.when(tile > 0)
    def _():
        out_ref[...] = out_ref[...] + part


# ----------------------------------------------------------------------------
# Wrapper
# ----------------------------------------------------------------------------
def ocgin_forward(x, adj, pool, w1s, b1s, w2s, b2s, center, hidden_dim,
                  eps_value=0.0):
    """Returns [z, center] exactly like OCGIN.forward (eval mode)."""
    num_layers = int(w1s.shape[0])
    hp = int(w1s.shape[-1])                  # padded hidden width (lane-dense 128x)
    n = int(x.shape[0])
    g = int(pool.shape[0])

    # Row-tile size: 256 keeps the 256-wide MXU of v6e/v7x full; 128 for tiny N.
    tm = 128 if n <= 128 else 256
    n_pad = _round_up(n, tm)
    g_pad = _round_up(g, 8)                  # unmasked sublane stores

    # Zero padding is exact: padded nodes are isolated (zero adj rows/cols) and
    # have zero pool membership, so they never reach the output.
    x_pad = jnp.zeros((n_pad, hp), jnp.bfloat16).at[:n, :x.shape[1]].set(
        x.astype(jnp.bfloat16))
    pool_pad = jnp.zeros((g_pad, n_pad), jnp.bfloat16).at[:g, :n].set(
        pool.astype(jnp.bfloat16))

    multi_layer = num_layers > 1
    n_tiles = n_pad // tm

    kernel = functools.partial(_ocgin_kernel, 1.0 + float(eps_value),
                               multi_layer)

    in_specs = [
        # x is only consumed at layer 0; afterwards pin block 0 (no re-fetch).
        pl.BlockSpec((tm, hp), lambda l, i: (jnp.where(l == 0, i, 0), 0)),
    ]
    operands = [x_pad]
    if multi_layer:
        adj_pad = jnp.zeros((n_pad, n_pad), jnp.bfloat16).at[:n, :n].set(
            adj.astype(jnp.bfloat16))
        # TODO(synk): on v7x, adjacency could be stored fp8 (0/1 exact) to halve
        # its HBM/VMEM bytes again; gated per generation, not done here.
        in_specs.append(pl.BlockSpec((tm, n_pad),
                                     lambda l, i: (jnp.where(l == 0, 0, i), 0)))
        operands.append(adj_pad)
    in_specs += [
        pl.BlockSpec((g_pad, tm), lambda l, i: (0, i)),          # pool columns
        pl.BlockSpec((None, hp, hp), lambda l, i: (l, 0, 0)),    # W1[l]
        pl.BlockSpec((None, 1, hp), lambda l, i: (l, 0, 0)),     # b1[l]
        pl.BlockSpec((None, hp, hp), lambda l, i: (l, 0, 0)),    # W2[l]
        pl.BlockSpec((None, 1, hp), lambda l, i: (l, 0, 0)),     # b2[l]
    ]
    operands += [pool_pad, w1s, b1s, w2s, b2s]

    scratch = []
    if multi_layer:
        scratch.append(pltpu.VMEM((2 * n_pad, hp), jnp.bfloat16))  # h ping-pong
    scratch.append(pltpu.VMEM((tm, hp), jnp.float32))              # f32 agg tile

    flops = (2 * n_pad * n_pad * hp * max(num_layers - 1, 0)       # A @ h
             + 4 * n_pad * hp * hp * num_layers                    # 2-layer MLP
             + 2 * g_pad * n_pad * hp * num_layers)                # pooling
    bytes_accessed = (x_pad.size * 2 + pool_pad.size * 2
                      + (operands[1].size * 2 if multi_layer else 0)
                      + (w1s.size + w2s.size) * 2
                      + (b1s.size + b2s.size) * 4
                      + g_pad * num_layers * hp * 4)

    # TODO(synk): the row-tile axis is 'arbitrary' because h lives in per-core
    # VMEM scratch; sharding it across v7x's two TensorCores would require
    # routing h through HBM/shared memory between layers.
    z_pad = pl.pallas_call(
        kernel,
        grid=(num_layers, n_tiles),
        in_specs=in_specs,
        out_specs=pl.BlockSpec((g_pad, hp), lambda l, i: (0, l)),
        out_shape=jax.ShapeDtypeStruct((g_pad, num_layers * hp), jnp.float32),
        scratch_shapes=scratch,
        compiler_params=pltpu.CompilerParams(
            dimension_semantics=("arbitrary", "arbitrary"),
            vmem_limit_bytes=48 * 1024 * 1024),
        cost_estimate=pl.CostEstimate(flops=int(flops), transcendentals=0,
                                      bytes_accessed=int(bytes_accessed)),
    )(*operands)

    # Drop padded graph rows and padded hidden lanes (exact zeros).
    z = (z_pad[:g].reshape(g, num_layers, hp)[:, :, :hidden_dim]
         .reshape(g, num_layers * hidden_dim))
    return [z, center]


# ----------------------------------------------------------------------------
# Parameter construction (deterministic, in-script)
# ----------------------------------------------------------------------------
def _fold_bn(gamma, beta, running_mean, running_var, bn_eps=1e-5):
    scale = gamma / jnp.sqrt(running_var + bn_eps)
    shift = beta - running_mean * scale
    return scale[None, :], shift[None, :]


def make_raw_params(key, dim_features, hidden_dim, num_layers):
    """Per-layer raw params: (W1, b1, bn1_scale, bn1_shift, W2, b2, bn2_scale, bn2_shift)."""
    params = []
    for layer in range(num_layers):
        d_in = dim_features if layer == 0 else hidden_dim
        key, k1, k2, k3, k4 = jax.random.split(key, 5)
        w1 = (jax.random.normal(k1, (d_in, hidden_dim), jnp.float32)
              * (1.0 / jnp.sqrt(d_in)))
        b1 = jax.random.normal(k2, (1, hidden_dim), jnp.float32) * 0.01
        w2 = (jax.random.normal(k3, (hidden_dim, hidden_dim), jnp.float32)
              * (1.0 / jnp.sqrt(hidden_dim)))
        b2 = jax.random.normal(k4, (1, hidden_dim), jnp.float32) * 0.01
        # BatchNorm eval mode: gamma=1, beta=0, running_mean=0, running_var=1.
        ones = jnp.ones((hidden_dim,), jnp.float32)
        zeros = jnp.zeros((hidden_dim,), jnp.float32)
        s1, t1 = _fold_bn(ones, zeros, zeros, ones)
        s2, t2 = _fold_bn(ones, zeros, zeros, ones)
        params.append((w1, b1, s1, t1, w2, b2, s2, t2))
    return params


def fold_pad_stack_params(raw_params, hidden_pad):
    """Fold eval-mode BN into weights/biases, zero-pad to lane-dense width, stack
    per-layer and cast weights to bf16 (biases stay f32 for the epilogue).
    Padded rows/cols are zero, so the padded activations are exactly zero."""
    w1_list, b1_list, w2_list, b2_list = [], [], [], []
    for (w1, b1, s1, t1, w2, b2, s2, t2) in raw_params:
        w1f = w1 * s1
        b1f = b1 * s1 + t1
        w2f = w2 * s2
        b2f = b2 * s2 + t2
        w1p = jnp.zeros((hidden_pad, hidden_pad), jnp.float32).at[
            :w1f.shape[0], :w1f.shape[1]].set(w1f)
        w2p = jnp.zeros((hidden_pad, hidden_pad), jnp.float32).at[
            :w2f.shape[0], :w2f.shape[1]].set(w2f)
        b1p = jnp.zeros((1, hidden_pad), jnp.float32).at[:, :b1f.shape[1]].set(b1f)
        b2p = jnp.zeros((1, hidden_pad), jnp.float32).at[:, :b2f.shape[1]].set(b2f)
        w1_list.append(w1p)
        w2_list.append(w2p)
        b1_list.append(b1p)
        b2_list.append(b2p)
    w1s = jnp.stack(w1_list).astype(jnp.bfloat16)   # [L, Hp, Hp]
    w2s = jnp.stack(w2_list).astype(jnp.bfloat16)   # [L, Hp, Hp]
    b1s = jnp.stack(b1_list)                        # [L, 1, Hp] f32
    b2s = jnp.stack(b2_list)                        # [L, 1, Hp] f32
    return w1s, b1s, w2s, b2s


# ----------------------------------------------------------------------------
# Pure-JAX reference (matches the kernel's bf16-operand / f32-accum numerics)
# ----------------------------------------------------------------------------
def ocgin_reference(x, adj, pool, raw_params, eps_value=0.0):
    def bdot(a, b):
        return jnp.dot(a.astype(jnp.bfloat16), b.astype(jnp.bfloat16),
                       preferred_element_type=jnp.float32)

    h = x
    zs = []
    for layer, (w1, b1, s1, t1, w2, b2, s2, t2) in enumerate(raw_params):
        w1f = w1 * s1
        b1f = b1 * s1 + t1
        w2f = w2 * s2
        b2f = b2 * s2 + t2
        if layer > 0:
            agg = (1.0 + eps_value) * h + bdot(adj, h)
        else:
            agg = h
        t = jnp.maximum(bdot(agg, w1f) + b1f, 0.0)
        t = jnp.maximum(bdot(t, w2f) + b2f, 0.0)
        h = t.astype(jnp.bfloat16).astype(jnp.float32)   # h stored bf16 in kernel
        zs.append(bdot(pool, h))
    return jnp.concatenate(zs, axis=1)


# ----------------------------------------------------------------------------
# Example / smoke test
# ----------------------------------------------------------------------------
if __name__ == "__main__":
    dim_features = 8
    hidden_dim = 32
    num_layers = 3
    num_graphs = 4
    nodes_per_graph = 8
    n_nodes = num_graphs * nodes_per_graph          # 32
    hidden_pad = _round_up(hidden_dim, 128)         # 128 (lane-dense)
    # TODO(synk): feature dims > 128 would need a separate padded width / K-tiling.
    assert dim_features <= hidden_pad

    key = jax.random.PRNGKey(0)
    key, kx = jax.random.split(key)
    x = jax.random.normal(kx, (n_nodes, dim_features), jnp.float32)

    # Ring topology inside each graph, symmetric dense adjacency.
    adj_np = np.zeros((n_nodes, n_nodes), np.float32)
    for gidx in range(num_graphs):
        base = gidx * nodes_per_graph
        for i in range(nodes_per_graph):
            s = base + i
            d = base + (i + 1) % nodes_per_graph
            adj_np[s, d] = 1.0
            adj_np[d, s] = 1.0
    adj = jnp.asarray(adj_np)

    # Sum-pooling membership matrix: pool[g, n] = 1 iff node n belongs to graph g.
    batch_assign = jnp.repeat(jnp.arange(num_graphs), nodes_per_graph)
    pool = (batch_assign[None, :] ==
            jnp.arange(num_graphs)[:, None]).astype(jnp.float32)

    raw_params = make_raw_params(key, dim_features, hidden_dim, num_layers)
    w1s, b1s, w2s, b2s = fold_pad_stack_params(raw_params, hidden_pad)

    # self.center = torch.zeros(1, dim_targets * num_layers)
    center = jnp.zeros((1, hidden_dim * num_layers), jnp.float32)

    z, c = ocgin_forward(x, adj, pool, w1s, b1s, w2s, b2s, center, hidden_dim)
    jax.block_until_ready(z)
    jax.block_until_ready(c)

    assert z.shape == (num_graphs, hidden_dim * num_layers), z.shape
    assert c.shape == (1, hidden_dim * num_layers), c.shape
    assert bool(jnp.all(jnp.isfinite(z)))

    # Numerical check against a pure-JAX reference with matching numerics.
    z_ref = ocgin_reference(x, adj, pool, raw_params)
    max_err = float(jnp.max(jnp.abs(z - z_ref)))
    assert bool(jnp.allclose(z, z_ref, rtol=1e-3, atol=1e-3)), max_err

    # TODO(synk): the GIN submodule's source was not provided; architecture follows
    # the standard OCGIN/GLOD reference (2-layer-MLP GINConv, sum pooling, per-layer
    # concat, BatchNorm in eval mode). Sparse edge_index batching is represented as
    # a dense adjacency + dense pooling matrix.
    print("KERNEL_OK")
</pallas_src>

<mosaic_0001>
module attributes {stable_mosaic.version = 11 : i64} {
  func.func @_ocgin_kernel(%arg0: i32, %arg1: i32, %arg2: memref<128x128xbf16, #tpu.memory_space<vmem>>, %arg3: memref<128x128xbf16, #tpu.memory_space<vmem>>, %arg4: memref<8x128xbf16, #tpu.memory_space<vmem>>, %arg5: memref<1x128x128xbf16, #tpu.memory_space<vmem>>, %arg6: memref<1x1x128xf32, #tpu.memory_space<vmem>>, %arg7: memref<1x128x128xbf16, #tpu.memory_space<vmem>>, %arg8: memref<1x1x128xf32, #tpu.memory_space<vmem>>, %arg9: memref<8x128xf32, #tpu.memory_space<vmem>>, %arg10: memref<256x128xbf16, #tpu.memory_space<vmem>>, %arg11: memref<128x128xf32, #tpu.memory_space<vmem>>) attributes {dimension_semantics = [#tpu.dimension_semantics<arbitrary>, #tpu.dimension_semantics<arbitrary>], iteration_bounds = array<i64: 3, 1>, scalar_prefetch = 0 : i64, scratch_operands = 2 : i64, tpu.core_type = #tpu.core_type<tc>, window_params = [{transform_indices = @transform_0, window_bounds = array<i64: 128, 128>}, {transform_indices = @transform_1, window_bounds = array<i64: 128, 128>}, {transform_indices = @transform_2, window_bounds = array<i64: 8, 128>}, {transform_indices = @transform_3, window_bounds = array<i64: 1, 128, 128>}, {transform_indices = @transform_4, window_bounds = array<i64: 1, 1, 128>}, {transform_indices = @transform_5, window_bounds = array<i64: 1, 128, 128>}, {transform_indices = @transform_6, window_bounds = array<i64: 1, 1, 128>}, {transform_indices = @transform_7, window_bounds = array<i64: 8, 128>}]} {
    %c0_i32 = arith.constant 0 : i32
    %0 = arith.cmpi eq, %arg0, %c0_i32 : i32
    %1 = arith.extui %0 : i1 to i32
    %c0_i32_0 = arith.constant 0 : i32
    %2 = arith.cmpi ne, %1, %c0_i32_0 : i32
    scf.if %2 {
      %c0_27 = arith.constant 0 : index
      %c0_28 = arith.constant 0 : index
      %39 = vector.load %arg2[%c0_27, %c0_28] : memref<128x128xbf16, #tpu.memory_space<vmem>>, vector<128x128xbf16>
      %40 = arith.extf %39 : vector<128x128xbf16> to vector<128x128xf32>
      %c0_29 = arith.constant 0 : index
      %c0_30 = arith.constant 0 : index
      %41 = vector.load %arg11[%c0_29, %c0_30] : memref<128x128xf32, #tpu.memory_space<vmem>>, vector<128x128xf32>
      tpu.vector_store %arg11[%c0_29, %c0_30], %40 {strides = array<i32>} : memref<128x128xf32, #tpu.memory_space<vmem>>, vector<128x128xf32>,
    } else {
    }
    %c0_i32_1 = arith.constant 0 : i32
    %3 = arith.cmpi sgt, %arg0, %c0_i32_1 : i32
    %4 = arith.extui %3 : i1 to i32
    %c0_i32_2 = arith.constant 0 : i32
    %5 = arith.cmpi ne, %4, %c0_i32_2 : i32
    scf.if %5 {
      %c2_i32_27 = arith.constant 2 : i32
      %39 = arith.remsi %arg0, %c2_i32_27 : i32
      %c1_i32 = arith.constant 1 : i32
      %40 = arith.subi %c1_i32, %39 : i32
      %c128_i32 = arith.constant 128 : i32
      %41 = arith.muli %40, %c128_i32 : i32
      %42 = tpu.assume_multiple %41, 128 : i32
      %c128_i32_28 = arith.constant 128 : i32
      %43 = arith.muli %arg1, %c128_i32_28 : i32
      %44 = arith.addi %41, %43 : i32
      %45 = tpu.assume_multiple %44, 128 : i32
      %46 = arith.index_cast %42 : i32 to index
      %c0_29 = arith.constant 0 : index
      %47 = vector.load %arg10[%46, %c0_29] : memref<256x128xbf16, #tpu.memory_space<vmem>>, vector<128x128xbf16>
      %48 = arith.index_cast %45 : i32 to index
      %c0_30 = arith.constant 0 : index
      %49 = vector.load %arg10[%48, %c0_30] : memref<256x128xbf16, #tpu.memory_space<vmem>>, vector<128x128xbf16>
      %50 = arith.extf %49 : vector<128x128xbf16> to vector<128x128xf32>
      %cst_31 = arith.constant 1.000000e+00 : f32
      %51 = vector.broadcast %cst_31 : f32 to vector<128x128xf32>
      %52 = arith.mulf %51, %50 : vector<128x128xf32>
      %c0_32 = arith.constant 0 : index
      %c0_33 = arith.constant 0 : index
      %53 = vector.load %arg3[%c0_32, %c0_33] : memref<128x128xbf16, #tpu.memory_space<vmem>>, vector<128x128xbf16>
      %cst_34 = arith.constant dense<0.000000e+00> : vector<128x128xf32>
      %54 = tpu.matmul %53, %47, %cst_34 {dimension_numbers = #tpu.dot_dimension_numbers<[1], [0], [0], [1], [0, 0, 1, 1], [], []>} : vector<128x128xbf16>, vector<128x128xbf16>, vector<128x128xf32> -> vector<128x128xf32>
      %55 = arith.addf %52, %54 : vector<128x128xf32>
      %c0_35 = arith.constant 0 : index
      %c0_36 = arith.constant 0 : index
      %56 = vector.load %arg11[%c0_35, %c0_36] : memref<128x128xf32, #tpu.memory_space<vmem>>, vector<128x128xf32>
      tpu.vector_store %arg11[%c0_35, %c0_36], %55 {strides = array<i32>} : memref<128x128xf32, #tpu.memory_space<vmem>>, vector<128x128xf32>,
    } else {
    }
    %c0 = arith.constant 0 : index
    %c0_3 = arith.constant 0 : index
    %6 = vector.load %arg11[%c0, %c0_3] : memref<128x128xf32, #tpu.memory_space<vmem>>, vector<128x128xf32>
    %7 = arith.truncf %6 : vector<128x128xf32> to vector<128x128xbf16>
    %c0_4 = arith.constant 0 : index
    %c0_5 = arith.constant 0 : index
    %c0_6 = arith.constant 0 : index
    %8 = vector.load %arg5[%c0_4, %c0_5, %c0_6] : memref<1x128x128xbf16, #tpu.memory_space<vmem>>, vector<1x128x128xbf16>
    %9 = vector.shape_cast %8 : vector<1x128x128xbf16> to vector<128x128xbf16>
    %cst = arith.constant dense<0.000000e+00> : vector<128x128xf32>
    %10 = tpu.matmul %7, %9, %cst {dimension_numbers = #tpu.dot_dimension_numbers<[1], [0], [0], [1], [0, 0, 1, 1], [], []>} : vector<128x128xbf16>, vector<128x128xbf16>, vector<128x128xf32> -> vector<128x128xf32>
    %c0_7 = arith.constant 0 : index
    %c0_8 = arith.constant 0 : index
    %c0_9 = arith.constant 0 : index
    %11 = vector.load %arg6[%c0_7, %c0_8, %c0_9] : memref<1x1x128xf32, #tpu.memory_space<vmem>>, vector<1x1x128xf32>
    %12 = vector.shape_cast %11 : vector<1x1x128xf32> to vector<1x128xf32>
    %13 = vector.broadcast %12 : vector<1x128xf32> to vector<128x128xf32>
    %14 = arith.addf %10, %13 : vector<128x128xf32>
    %cst_10 = arith.constant 0.000000e+00 : f32
    %15 = vector.broadcast %cst_10 : f32 to vector<128x128xf32>
    %16 = arith.maximumf %14, %15 : vector<128x128xf32>
    %17 = arith.truncf %16 : vector<128x128xf32> to vector<128x128xbf16>
    %c0_11 = arith.constant 0 : index
    %c0_12 = arith.constant 0 : index
    %c0_13 = arith.constant 0 : index
    %18 = vector.load %arg7[%c0_11, %c0_12, %c0_13] : memref<1x128x128xbf16, #tpu.memory_space<vmem>>, vector<1x128x128xbf16>
    %19 = vector.shape_cast %18 : vector<1x128x128xbf16> to vector<128x128xbf16>
    %cst_14 = arith.constant dense<0.000000e+00> : vector<128x128xf32>
    %20 = tpu.matmul %17, %19, %cst_14 {dimension_numbers = #tpu.dot_dimension_numbers<[1], [0], [0], [1], [0, 0, 1, 1], [], []>} : vector<128x128xbf16>, vector<128x128xbf16>, vector<128x128xf32> -> vector<128x128xf32>
    %c0_15 = arith.constant 0 : index
    %c0_16 = arith.constant 0 : index
    %c0_17 = arith.constant 0 : index
    %21 = vector.load %arg8[%c0_15, %c0_16, %c0_17] : memref<1x1x128xf32, #tpu.memory_space<vmem>>, vector<1x1x128xf32>
    %22 = vector.shape_cast %21 : vector<1x1x128xf32> to vector<1x128xf32>
    %23 = vector.broadcast %22 : vector<1x128xf32> to vector<128x128xf32>
    %24 = arith.addf %20, %23 : vector<128x128xf32>
    %cst_18 = arith.constant 0.000000e+00 : f32
    %25 = vector.broadcast %cst_18 : f32 to vector<128x128xf32>
    %26 = arith.maximumf %24, %25 : vector<128x128xf32>
    %27 = arith.truncf %26 : vector<128x128xf32> to vector<128x128xbf16>
    %c2_i32 = arith.constant 2 : i32
    %28 = arith.cmpi slt, %arg0, %c2_i32 : i32
    %29 = arith.extui %28 : i1 to i32
    %c0_i32_19 = arith.constant 0 : i32
    %30 = arith.cmpi ne, %29, %c0_i32_19 : i32
    scf.if %30 {
      %c2_i32_27 = arith.constant 2 : i32
      %39 = arith.remsi %arg0, %c2_i32_27 : i32
      %c128_i32 = arith.constant 128 : i32
      %40 = arith.muli %39, %c128_i32 : i32
      %c128_i32_28 = arith.constant 128 : i32
      %41 = arith.muli %arg1, %c128_i32_28 : i32
      %42 = arith.addi %40, %41 : i32
      %43 = tpu.assume_multiple %42, 128 : i32
      %44 = arith.index_cast %43 : i32 to index
      %c0_29 = arith.constant 0 : index
      %45 = vector.load %arg10[%44, %c0_29] : memref<256x128xbf16, #tpu.memory_space<vmem>>, vector<128x128xbf16>
      tpu.vector_store %arg10[%44, %c0_29], %27 {strides = array<i32>} : memref<256x128xbf16, #tpu.memory_space<vmem>>, vector<128x128xbf16>,
    } else {
    }
    %c0_20 = arith.constant 0 : index
    %c0_21 = arith.constant 0 : index
    %31 = vector.load %arg4[%c0_20, %c0_21] : memref<8x128xbf16, #tpu.memory_space<vmem>>, vector<8x128xbf16>
    %cst_22 = arith.constant dense<0.000000e+00> : vector<8x128xf32>
    %32 = tpu.matmul %31, %27, %cst_22 {dimension_numbers = #tpu.dot_dimension_numbers<[1], [0], [0], [1], [0, 0, 1, 1], [], []>} : vector<8x128xbf16>, vector<128x128xbf16>, vector<8x128xf32> -> vector<8x128xf32>
    %c0_i32_23 = arith.constant 0 : i32
    %33 = arith.cmpi eq, %arg1, %c0_i32_23 : i32
    %34 = arith.extui %33 : i1 to i32
    %c0_i32_24 = arith.constant 0 : i32
    %35 = arith.cmpi ne, %34, %c0_i32_24 : i32
    scf.if %35 {
      %c0_27 = arith.constant 0 : index
      %c0_28 = arith.constant 0 : index
      %39 = vector.load %arg9[%c0_27, %c0_28] : memref<8x128xf32, #tpu.memory_space<vmem>>, vector<8x128xf32>
      tpu.vector_store %arg9[%c0_27, %c0_28], %32 {strides = array<i32>} : memref<8x128xf32, #tpu.memory_space<vmem>>, vector<8x128xf32>,
    } else {
    }
    %c0_i32_25 = arith.constant 0 : i32
    %36 = arith.cmpi sgt, %arg1, %c0_i32_25 : i32
    %37 = arith.extui %36 : i1 to i32
    %c0_i32_26 = arith.constant 0 : i32
    %38 = arith.cmpi ne, %37, %c0_i32_26 : i32
    scf.if %38 {
      %c0_27 = arith.constant 0 : index
      %c0_28 = arith.constant 0 : index
      %39 = vector.load %arg9[%c0_27, %c0_28] : memref<8x128xf32, #tpu.memory_space<vmem>>, vector<8x128xf32>
      %40 = arith.addf %39, %32 : vector<8x128xf32>
      %c0_29 = arith.constant 0 : index
      %c0_30 = arith.constant 0 : index
      %41 = vector.load %arg9[%c0_29, %c0_30] : memref<8x128xf32, #tpu.memory_space<vmem>>, vector<8x128xf32>
      tpu.vector_store %arg9[%c0_29, %c0_30], %40 {strides = array<i32>} : memref<8x128xf32, #tpu.memory_space<vmem>>, vector<8x128xf32>,
    } else {
    }
    return
  }
  func.func @transform_0(%arg0: i32, %arg1: i32) -> (i32, i32) {
    %c0_i32 = arith.constant 0 : i32
    %0 = arith.cmpi eq, %arg0, %c0_i32 : i32
    %c0_i32_0 = arith.constant 0 : i32
    %1 = arith.select %0, %arg1, %c0_i32_0 : i32
    %c0_i32_1 = arith.constant 0 : i32
    %c0_i32_2 = arith.constant 0 : i32
    return %1, %c0_i32_1 : i32, i32
  }
  func.func @transform_1(%arg0: i32, %arg1: i32) -> (i32, i32) {
    %c0_i32 = arith.constant 0 : i32
    %0 = arith.cmpi eq, %arg0, %c0_i32 : i32
    %c0_i32_0 = arith.constant 0 : i32
    %1 = arith.select %0, %c0_i32_0, %arg1 : i32
    %c0_i32_1 = arith.constant 0 : i32
    %c0_i32_2 = arith.constant 0 : i32
    return %1, %c0_i32_1 : i32, i32
  }
  func.func @transform_2(%arg0: i32, %arg1: i32) -> (i32, i32) {
    %c0_i32 = arith.constant 0 : i32
    %c0_i32_0 = arith.constant 0 : i32
    return %c0_i32, %arg1 : i32, i32
  }
  func.func @transform_3(%arg0: i32, %arg1: i32) -> (i32, i32, i32) {
    %c0_i32 = arith.constant 0 : i32
    %c0_i32_0 = arith.constant 0 : i32
    %c0_i32_1 = arith.constant 0 : i32
    return %arg0, %c0_i32, %c0_i32_0 : i32, i32, i32
  }
  func.func @transform_4(%arg0: i32, %arg1: i32) -> (i32, i32, i32) {
    %c0_i32 = arith.constant 0 : i32
    %c0_i32_0 = arith.constant 0 : i32
    %c0_i32_1 = arith.constant 0 : i32
    return %arg0, %c0_i32, %c0_i32_0 : i32, i32, i32
  }
  func.func @transform_5(%arg0: i32, %arg1: i32) -> (i32, i32, i32) {
    %c0_i32 = arith.constant 0 : i32
    %c0_i32_0 = arith.constant 0 : i32
    %c0_i32_1 = arith.constant 0 : i32
    return %arg0, %c0_i32, %c0_i32_0 : i32, i32, i32
  }
  func.func @transform_6(%arg0: i32, %arg1: i32) -> (i32, i32, i32) {
    %c0_i32 = arith.constant 0 : i32
    %c0_i32_0 = arith.constant 0 : i32
    %c0_i32_1 = arith.constant 0 : i32
    return %arg0, %c0_i32, %c0_i32_0 : i32, i32, i32
  }
  func.func @transform_7(%arg0: i32, %arg1: i32) -> (i32, i32) {
    %c0_i32 = arith.constant 0 : i32
    %c0_i32_0 = arith.constant 0 : i32
    return %c0_i32, %arg0 : i32, i32
  }
}

</mosaic_0001>

<llo_original>
// kernel: tpu_custom_call.1
$region0: #{tpu_custom_call.1}
  #allocation0 [shape = 'u32[]', space=smem, size = 0x4, offset = 0x4, fixed_abs, tag = 'smem constant byte address 0x4 - core index']
  #allocation1 [shape = 'u32[144,128]{1,0:T(1,128)}', space=vmem, size = 0x12000, scoped, tag = 'internal scratch']
  #allocation2 [shape = 'bf16[256,128]{1,0:T(16,128)(2,1)}', space=vmem, size = 0x10000, scoped, tag = 'scratch operand']
  #allocation3 [shape = 'f32[128,128]{1,0:T(8,128)}', space=vmem, size = 0x10000, scoped, tag = 'scratch operand']
  %s0 = inlined_call_operand.hbm [shape: bf16[128,128], index: 0, kind: input, shape index: {}]
  %s1 = inlined_call_operand.hbm [shape: bf16[128,128], index: 1, kind: input, shape index: {}]
  %s2 = inlined_call_operand.vmem [shape: bf16[8,128], index: 2, kind: input, shape index: {}]
  %s3 = inlined_call_operand.hbm [shape: bf16[3,128,128], index: 3, kind: input, shape index: {}]
  %s4 = inlined_call_operand.vmem [shape: f32[3,1,128], index: 4, kind: input, shape index: {}]
  %s5 = inlined_call_operand.hbm [shape: bf16[3,128,128], index: 5, kind: input, shape index: {}]
  %s6 = inlined_call_operand.vmem [shape: f32[3,1,128], index: 6, kind: input, shape index: {}]
  %s7 = inlined_call_operand.hbm [shape: f32[8,384], index: 7, kind: output, shape index: {}]
  %s8 = sld [smem:[#allocation0]]
  $region97: #{tpu_custom_call.1} parent=0
    _
  %s10 = ssub.s32 1, %s8
  %s11 = scalar_select 0, %s10, %s8
  $region1: #{tpu_custom_call.1} parent=0
    #allocation4 [shape = 'u8[65536]{0}', space=vmem, size = 0x10000, scoped, tag = 'input window, operand 0']
    #allocation5 [shape = 's32[2]{0}', space=sflag, size = 0x8, scoped, tag = 'scoped memory for tpu_custom_call.1']
    #allocation6 [shape = 's32[2]{0}', space=sflag, size = 0x8, scoped, tag = 'scoped memory for tpu_custom_call.1']
    #allocation7 [shape = 'u8[65536]{0}', space=vmem, size = 0x10000, scoped, tag = 'input window, operand 1']
    #allocation8 [shape = 's32[2]{0}', space=sflag, size = 0x8, scoped, tag = 'scoped memory for tpu_custom_call.1']
    #allocation9 [shape = 'u8[65536]{0}', space=vmem, size = 0x10000, scoped, tag = 'input window, operand 3']
    #allocation10 [shape = 'u8[65536]{0}', space=vmem, size = 0x10000, scoped, tag = 'input window, operand 5']
    #allocation11 [shape = 's32[2]{0}', space=sflag, size = 0x8, scoped, tag = 'scoped memory for tpu_custom_call.1']
    #allocation12 [shape = 'u8[8192]{0}', space=vmem, size = 0x2000, scoped, tag = 'output window, operand 0']
    %12 = vsyncpa [#allocation5], 0
    %s13 = scalar_lea.sflag [#allocation5], 1
    %14 = vsyncpa %s13, 0
    %15 = vsyncpa [#allocation8], 0
    %s16 = scalar_lea.sflag [#allocation8], 1
    %17 = vsyncpa %s16, 0
    %18 = vsyncpa [#allocation11], 0
    %s19 = scalar_lea.sflag [#allocation11], 1
    %20 = vsyncpa %s19, 0
    %21 = vsyncpa [#allocation6], 0
    %s22 = scalar_lea.sflag [#allocation6], 1
    %23 = vsyncpa %s22, 0
    loop: start=0, step=1, limit=5
    $region2: #{tpu_custom_call.1} parent=1 // loop_pre_header
      _
    $region3: #{tpu_custom_call.1} parent=1 // loop_header
      %s25 = sphi 0, %s29
      %p26 = scmp.ge.s32.totalorder %s25, 5
      %s32 = sphi 0, %s44
      %s33 = sphi 0, %s40
      %s34 = sphi 0, %s32
      %s35 = sphi 0, %s33
      %s36 = sphi 0, %s34
      %s37 = sphi 0, %s35
      %s51 = sphi 0, %s53
      %s54 = sphi 0, %s51
      %s55 = sphi 0, %s54
      %s71 = sphi 0, %s55
      %s81 = sphi 0, %s83
      %s84 = sphi 0, %s81
      %s85 = sphi 0, %s84
      %s101 = sphi 0, %s85
      %s107 = sphi 0, %s109
      %s110 = sphi 0, %s107
      %s111 = sphi 0, %s110
      %s127 = sphi 0, %s111
      %s133 = sphi 0, %s135
      %s136 = sphi 0, %s133
      %s137 = sphi 0, %s136
      %s153 = sphi 0, %s137
      %s159 = sphi 0, %s161
      %s162 = sphi 0, %s159
      %s163 = sphi 0, %s162
      %s179 = sphi 0, %s163
      %s185 = sphi 0, %s187
      %s188 = sphi 0, %s185
      %s189 = sphi 0, %s188
      %s205 = sphi 0, %s189
      %s211 = sphi 0, %s213
      %s214 = sphi 0, %s211
      %s215 = sphi 0, %s214
      %s231 = sphi 0, %s215
      %s237 = sphi 0, %s239
      %s240 = sphi 0, %s237
      %s241 = sphi 0, %s240
      %s257 = sphi 0, %s241
    $region4: #{tpu_custom_call.1} parent=1 // loop_header_branch
      %28 = sbr.rel (%p26) target = $region8
    $region5: #{tpu_custom_call.1} parent=1 // loop_body
      %s30 = ssub.s32 %s25, 1
      %s31 = ssub.s32 %s25, 2
      %s38 = sadd.s32 1, %s33
      %p39 = scmp.ge.s32.totalorder %s38, 1
      %s40 = scalar_select %p39, 0, %s38
      %s41 = sadd.s32 1, %s32
      %s42 = scalar_select %p39, %s41, %s32
      %p43 = scmp.ge.s32.totalorder %s42, 3
      %s44 = scalar_select %p43, 0, %s42
      %p45 = scmp.eq.s32.totalorder %s32, 0
      %s46 = scalar_select %p45, %s33, 0
      %p47 = scmp.eq.s32.totalorder %s44, 0
      %s48 = scalar_select %p47, %s40, 0
      %s49 = ssub.s32 %s46, %s48
      %p50 = scmp.eq.s32.totalorder %s49, 0
      %s52 = sadd.s32 %s51, 1
      %s53 = scalar_select %p50, %s51, %s52
      %p56 = pneg %p50
      %p57 = scmp.eq.s32.totalorder %s25, 2
      %p58 = por %p56, %p57
      %p59 = scmp.ne.s32.totalorder %s51, %s54
      %p60 = scmp.eq.s32.totalorder %s25, 0
      %p61 = por %p59, %p60
      %p62 = scmp.ne.s32.totalorder %s51, %s54
      %p63 = scmp.eq.s32.totalorder %s30, 2
      %p64 = por %p62, %p63
      %p65 = scmp.ne.s32.totalorder %s54, %s55
      %p66 = scmp.eq.s32.totalorder %s30, 0
      %p67 = por %p65, %p66
      %p68 = scmp.ne.s32.totalorder %s54, %s55
      %p69 = scmp.eq.s32.totalorder %s31, 2
      %p70 = por %p68, %p69
      %p72 = scmp.ne.s32.totalorder %s55, %s71
      %p73 = scmp.eq.s32.totalorder %s31, 0
      %p74 = por %p72, %p73
      %p75 = scmp.eq.s32.totalorder %s32, 0
      %s76 = scalar_select %p75, 0, %s33
      %p77 = scmp.eq.s32.totalorder %s44, 0
      %s78 = scalar_select %p77, 0, %s40
      %s79 = ssub.s32 %s76, %s78
      %p80 = scmp.eq.s32.totalorder %s79, 0
      %s82 = sadd.s32 %s81, 1
      %s83 = scalar_select %p80, %s81, %s82
      %p86 = pneg %p80
      %p87 = scmp.eq.s32.totalorder %s25, 2
      %p88 = por %p86, %p87
      %p89 = scmp.ne.s32.totalorder %s81, %s84
      %p90 = scmp.eq.s32.totalorder %s25, 0
      %p91 = por %p89, %p90
      %p92 = scmp.ne.s32.totalorder %s81, %s84
      %p93 = scmp.eq.s32.totalorder %s30, 2
      %p94 = por %p92, %p93
      %p95 = scmp.ne.s32.totalorder %s84, %s85
      %p96 = scmp.eq.s32.totalorder %s30, 0
      %p97 = por %p95, %p96
      %p98 = scmp.ne.s32.totalorder %s84, %s85
      %p99 = scmp.eq.s32.totalorder %s31, 2
      %p100 = por %p98, %p99
      %p102 = scmp.ne.s32.totalorder %s85, %s101
      %p103 = scmp.eq.s32.totalorder %s31, 0
      %p104 = por %p102, %p103
      %s105 = ssub.s32 %s33, %s40
      %p106 = scmp.eq.s32.totalorder %s105, 0
      %s108 = sadd.s32 %s107, 1
      %s109 = scalar_select %p106, %s107, %s108
      %p112 = pneg %p106
      %p113 = scmp.eq.s32.totalorder %s25, 2
      %p114 = por %p112, %p113
      %p115 = scmp.ne.s32.totalorder %s107, %s110
      %p116 = scmp.eq.s32.totalorder %s25, 0
      %p117 = por %p115, %p116
      %p118 = scmp.ne.s32.totalorder %s107, %s110
      %p119 = scmp.eq.s32.totalorder %s30, 2
      %p120 = por %p118, %p119
      %p121 = scmp.ne.s32.totalorder %s110, %s111
      %p122 = scmp.eq.s32.totalorder %s30, 0
      %p123 = por %p121, %p122
      %p124 = scmp.ne.s32.totalorder %s110, %s111
      %p125 = scmp.eq.s32.totalorder %s31, 2
      %p126 = por %p124, %p125
      %p128 = scmp.ne.s32.totalorder %s111, %s127
      %p129 = scmp.eq.s32.totalorder %s31, 0
      %p130 = por %p128, %p129
      %s131 = ssub.s32 %s32, %s44
      %p132 = scmp.eq.s32.totalorder %s131, 0
      %s134 = sadd.s32 %s133, 1
      %s135 = scalar_select %p132, %s133, %s134
      %p138 = pneg %p132
      %p139 = scmp.eq.s32.totalorder %s25, 2
      %p140 = por %p138, %p139
      %p141 = scmp.ne.s32.totalorder %s133, %s136
      %p142 = scmp.eq.s32.totalorder %s25, 0
      %p143 = por %p141, %p142
      %p144 = scmp.ne.s32.totalorder %s133, %s136
      %p145 = scmp.eq.s32.totalorder %s30, 2
      %p146 = por %p144, %p145
      %p147 = scmp.ne.s32.totalorder %s136, %s137
      %p148 = scmp.eq.s32.totalorder %s30, 0
      %p149 = por %p147, %p148
      %p150 = scmp.ne.s32.totalorder %s136, %s137
      %p151 = scmp.eq.s32.totalorder %s31, 2
      %p152 = por %p150, %p151
      %p154 = scmp.ne.s32.totalorder %s137, %s153
      %p155 = scmp.eq.s32.totalorder %s31, 0
      %p156 = por %p154, %p155
      %s157 = ssub.s32 %s32, %s44
      %p158 = scmp.eq.s32.totalorder %s157, 0
      %s160 = sadd.s32 %s159, 1
      %s161 = scalar_select %p158, %s159, %s160
      %p164 = pneg %p158
      %p165 = scmp.eq.s32.totalorder %s25, 2
      %p166 = por %p164, %p165
      %p167 = scmp.ne.s32.totalorder %s159, %s162
      %p168 = scmp.eq.s32.totalorder %s25, 0
      %p169 = por %p167, %p168
      %p170 = scmp.ne.s32.totalorder %s159, %s162
      %p171 = scmp.eq.s32.totalorder %s30, 2
      %p172 = por %p170, %p171
      %p173 = scmp.ne.s32.totalorder %s162, %s163
      %p174 = scmp.eq.s32.totalorder %s30, 0
      %p175 = por %p173, %p174
      %p176 = scmp.ne.s32.totalorder %s162, %s163
      %p177 = scmp.eq.s32.totalorder %s31, 2
      %p178 = por %p176, %p177
      %p180 = scmp.ne.s32.totalorder %s163, %s179
      %p181 = scmp.eq.s32.totalorder %s31, 0
      %p182 = por %p180, %p181
      %s183 = ssub.s32 %s32, %s44
      %p184 = scmp.eq.s32.totalorder %s183, 0
      %s186 = sadd.s32 %s185, 1
      %s187 = scalar_select %p184, %s185, %s186
      %p190 = pneg %p184
      %p191 = scmp.eq.s32.totalorder %s25, 2
      %p192 = por %p190, %p191
      %p193 = scmp.ne.s32.totalorder %s185, %s188
      %p194 = scmp.eq.s32.totalorder %s25, 0
      %p195 = por %p193, %p194
      %p196 = scmp.ne.s32.totalorder %s185, %s188
      %p197 = scmp.eq.s32.totalorder %s30, 2
      %p198 = por %p196, %p197
      %p199 = scmp.ne.s32.totalorder %s188, %s189
      %p200 = scmp.eq.s32.totalorder %s30, 0
      %p201 = por %p199, %p200
      %p202 = scmp.ne.s32.totalorder %s188, %s189
      %p203 = scmp.eq.s32.totalorder %s31, 2
      %p204 = por %p202, %p203
      %p206 = scmp.ne.s32.totalorder %s189, %s205
      %p207 = scmp.eq.s32.totalorder %s31, 0
      %p208 = por %p206, %p207
      %s209 = ssub.s32 %s32, %s44
      %p210 = scmp.eq.s32.totalorder %s209, 0
      %s212 = sadd.s32 %s211, 1
      %s213 = scalar_select %p210, %s211, %s212
      %p216 = pneg %p210
      %p217 = scmp.eq.s32.totalorder %s25, 2
      %p218 = por %p216, %p217
      %p219 = scmp.ne.s32.totalorder %s211, %s214
      %p220 = scmp.eq.s32.totalorder %s25, 0
      %p221 = por %p219, %p220
      %p222 = scmp.ne.s32.totalorder %s211, %s214
      %p223 = scmp.eq.s32.totalorder %s30, 2
      %p224 = por %p222, %p223
      %p225 = scmp.ne.s32.totalorder %s214, %s215
      %p226 = scmp.eq.s32.totalorder %s30, 0
      %p227 = por %p225, %p226
      %p228 = scmp.ne.s32.totalorder %s214, %s215
      %p229 = scmp.eq.s32.totalorder %s31, 2
      %p230 = por %p228, %p229
      %p232 = scmp.ne.s32.totalorder %s215, %s231
      %p233 = scmp.eq.s32.totalorder %s31, 0
      %p234 = por %p232, %p233
      %s235 = ssub.s32 %s32, %s44
      %p236 = scmp.eq.s32.totalorder %s235, 0
      %s238 = sadd.s32 %s237, 1
      %s239 = scalar_select %p236, %s237, %s238
      %p242 = pneg %p236
      %p243 = scmp.eq.s32.totalorder %s25, 2
      %p244 = por %p242, %p243
      %p245 = scmp.ne.s32.totalorder %s237, %s240
      %p246 = scmp.eq.s32.totalorder %s25, 0
      %p247 = por %p245, %p246
      %p248 = scmp.ne.s32.totalorder %s237, %s240
      %p249 = scmp.eq.s32.totalorder %s30, 2
      %p250 = por %p248, %p249
      %p251 = scmp.ne.s32.totalorder %s240, %s241
      %p252 = scmp.eq.s32.totalorder %s30, 0
      %p253 = por %p251, %p252
      %p254 = scmp.ne.s32.totalorder %s240, %s241
      %p255 = scmp.eq.s32.totalorder %s31, 2
      %p256 = por %p254, %p255
      %p258 = scmp.ne.s32.totalorder %s241, %s257
      %p259 = scmp.eq.s32.totalorder %s31, 0
      %p260 = por %p258, %p259
      %p261 = scmp.le.s32.totalorder 1, %s25
      %p262 = scmp.lt.s32.totalorder %s25, 4
      %p263 = pnand %p261, %p262
      %p264 = pneg %p263
      // Predicated region
      $region9: #{tpu_custom_call.1} parent=5 // pred_check
        _
      $region10: #{tpu_custom_call.1} parent=5 // pred_check_branch
        %266 = sbr.rel (%p263) target = $region12
      $region11: #{tpu_custom_call.1} parent=5 // pred_region
        %s267 = ssub.s32 %s25, 1
        // Predicated region
        $region13: #{tpu_custom_call.1} parent=11 // pred_check
          %p268 = pneg %p123
        $region14: #{tpu_custom_call.1} parent=11 // pred_check_branch
          %270 = sbr.rel (%p268) target = $region16
        $region15: #{tpu_custom_call.1} parent=11 // pred_region
          %p271 = scmp.lt.s32.totalorder %s35, 0
          %s272 = scalar_select %p271, %s35, 0
          %s273 = smul.addr %s272, 4
          %s274 = scalar_lea.vmem %s2, %s273
        $region16: #{tpu_custom_call.1} parent=11 // pred_fallthru
          _
      $region12: #{tpu_custom_call.1} parent=5 // pred_fallthru
        _
      %p275 = scmp.lt.s32.totalorder %s25, 3
      // Predicated region
      $region17: #{tpu_custom_call.1} parent=5 // pred_check
        %p276 = pneg %p275
      $region18: #{tpu_custom_call.1} parent=5 // pred_check_branch
        %278 = sbr.rel (%p276) target = $region20
      $region19: #{tpu_custom_call.1} parent=5 // pred_region
        // Predicated region
        $region21: #{tpu_custom_call.1} parent=19 // pred_check
          %p279 = pneg %p61
        $region22: #{tpu_custom_call.1} parent=19 // pred_check_branch
          %281 = sbr.rel (%p279) target = $region24
        $region23: #{tpu_custom_call.1} parent=19 // pred_region
          %s282 = sand.u32 %s51, 1
          %s283 = scalar_lea.sflag [#allocation5], %s282
          %s284 = sand.u32 %s51, 1
          %s285 = smul.addr %s284, 64
          %s286 = scalar_lea.vmem [#allocation4], %s285
          %p287 = scmp.eq.s32.totalorder %s32, 0
          %s288 = scalar_select %p287, %s33, 0
          %s289 = smul.u32 16, %s288
          %s291 = ssub.s32 1024, 1024
          %292 = vsyncadd %s283, %s291
          %s293 = smul.addr %s289, 64
          %s294 = scalar_lea.hbm %s0, %s293
          %s295 = sshll.u32 %s286, 4
          %s296 = int_to_ptr.vmem [resolvable:$true] %s295
          %301 = dma.hbm_to_vmem [thread:$0]  %s294, 1024, %s296, %s283, 64, 64, 4
        $region24: #{tpu_custom_call.1} parent=19 // pred_fallthru
          _
        // Predicated region
        $region25: #{tpu_custom_call.1} parent=19 // pred_check
          %p302 = pneg %p91
        $region26: #{tpu_custom_call.1} parent=19 // pred_check_branch
          %304 = sbr.rel (%p302) target = $region28
        $region27: #{tpu_custom_call.1} parent=19 // pred_region
          %s305 = sand.u32 %s25, 1
          %s306 = scalar_lea.sflag [#allocation8], %s305
          %s307 = sand.u32 %s81, 1
          %s308 = smul.addr %s307, 64
          %s309 = scalar_lea.vmem [#allocation7], %s308
          %p310 = scmp.eq.s32.totalorder %s32, 0
          %s311 = scalar_select %p310, 0, %s33
          %s312 = smul.u32 16, %s311
          %s314 = ssub.s32 1024, 1024
          %315 = vsyncadd %s306, %s314
          %s316 = smul.addr %s312, 64
          %s317 = scalar_lea.hbm %s1, %s316
          %s318 = sshll.u32 %s309, 4
          %s319 = int_to_ptr.vmem [resolvable:$true] %s318
          %324 = dma.hbm_to_vmem [thread:$0]  %s317, 1024, %s319, %s306, 64, 64, 4
        $region28: #{tpu_custom_call.1} parent=19 // pred_fallthru
          _
        // Predicated region
        $region29: #{tpu_custom_call.1} parent=19 // pred_check
          %p325 = pneg %p143
        $region30: #{tpu_custom_call.1} parent=19 // pred_check_branch
          %327 = sbr.rel (%p325) target = $region32
        $region31: #{tpu_custom_call.1} parent=19 // pred_region
          %s328 = sand.u32 %s25, 1
          %s329 = scalar_lea.sflag [#allocation8], %s328
          %s330 = sand.u32 %s133, 1
          %s331 = smul.addr %s330, 64
          %s332 = scalar_lea.vmem [#allocation9], %s331
          %s334 = ssub.s32 1024, 1024
          %335 = vsyncadd %s329, %s334
          %s336 = smul.addr %s32, 16
          %s337 = smul.addr %s336, 64
          %s338 = scalar_lea.hbm %s3, %s337
          %s339 = sshll.u32 %s332, 4
          %s340 = int_to_ptr.vmem [resolvable:$true] %s339
          %345 = dma.hbm_to_vmem [thread:$0]  %s338, 1024, %s340, %s329, 64, 64, 4
        $region32: #{tpu_custom_call.1} parent=19 // pred_fallthru
          _
        // Predicated region
        $region33: #{tpu_custom_call.1} parent=19 // pred_check
          %p346 = pneg %p169
        $region34: #{tpu_custom_call.1} parent=19 // pred_check_branch
          %348 = sbr.rel (%p346) target = $region36
        $region35: #{tpu_custom_call.1} parent=19 // pred_region
          %p349 = scmp.lt.s32.totalorder %s32, 2
          %s350 = scalar_select %p349, %s32, 2
          %s351 = scalar_lea.vmem %s4, %s350
        $region36: #{tpu_custom_call.1} parent=19 // pred_fallthru
          _
        // Predicated region
        $region37: #{tpu_custom_call.1} parent=19 // pred_check
          %p352 = pneg %p195
        $region38: #{tpu_custom_call.1} parent=19 // pred_check_branch
          %354 = sbr.rel (%p352) target = $region40
        $region39: #{tpu_custom_call.1} parent=19 // pred_region
          %s355 = sand.u32 %s185, 1
          %s356 = scalar_lea.sflag [#allocation11], %s355
          %s357 = sand.u32 %s185, 1
          %s358 = smul.addr %s357, 64
          %s359 = scalar_lea.vmem [#allocation10], %s358
          %s361 = ssub.s32 1024, 1024
          %362 = vsyncadd %s356, %s361
          %s363 = smul.addr %s32, 16
          %s364 = smul.addr %s363, 64
          %s365 = scalar_lea.hbm %s5, %s364
          %s366 = sshll.u32 %s359, 4
          %s367 = int_to_ptr.vmem [resolvable:$true] %s366
          %372 = dma.hbm_to_vmem [thread:$0]  %s365, 1024, %s367, %s356, 64, 64, 4
        $region40: #{tpu_custom_call.1} parent=19 // pred_fallthru
          _
        // Predicated region
        $region41: #{tpu_custom_call.1} parent=19 // pred_check
          %p373 = pneg %p221
        $region42: #{tpu_custom_call.1} parent=19 // pred_check_branch
          %375 = sbr.rel (%p373) target = $region44
        $region43: #{tpu_custom_call.1} parent=19 // pred_region
          %p376 = scmp.lt.s32.totalorder %s32, 2
          %s377 = scalar_select %p376, %s32, 2
          %s378 = scalar_lea.vmem %s6, %s377
        $region44: #{tpu_custom_call.1} parent=19 // pred_fallthru
          _
      $region20: #{tpu_custom_call.1} parent=5 // pred_fallthru
        _
      %p379 = scmp.le.s32.totalorder 1, %s25
      %p380 = scmp.lt.s32.totalorder %s25, 4
      %p381 = pnand %p379, %p380
      %p382 = pneg %p381
      // Predicated region
      $region45: #{tpu_custom_call.1} parent=5 // pred_check
        _
      $region46: #{tpu_custom_call.1} parent=5 // pred_check_branch
        %384 = sbr.rel (%p381) target = $region48
      $region47: #{tpu_custom_call.1} parent=5 // pred_region
        %s385 = ssub.s32 %s25, 1
        %s386 = sand.u32 %s54, 1
        %s387 = scalar_lea.sflag [#allocation5], %s386
        %s388 = sand.u32 %s54, 1
        %s389 = smul.addr %s388, 64
        %s390 = scalar_lea.vmem [#allocation4], %s389
        // Predicated region
        $region49: #{tpu_custom_call.1} parent=47 // pred_check
          %p391 = pneg %p67
        $region50: #{tpu_custom_call.1} parent=47 // pred_check_branch
          %393 = sbr.rel (%p391) target = $region52
        $region51: #{tpu_custom_call.1} parent=47 // pred_region
          %394 = dma.done %s387, 1024
        $region52: #{tpu_custom_call.1} parent=47 // pred_fallthru
          _
        %s395 = sand.u32 %s30, 1
        %s396 = scalar_lea.sflag [#allocation8], %s395
        %s397 = sand.u32 %s84, 1
        %s398 = smul.addr %s397, 64
        %s399 = scalar_lea.vmem [#allocation7], %s398
        // Predicated region
        $region53: #{tpu_custom_call.1} parent=47 // pred_check
          %p400 = pneg %p97
        $region54: #{tpu_custom_call.1} parent=47 // pred_check_branch
          %402 = sbr.rel (%p400) target = $region56
        $region55: #{tpu_custom_call.1} parent=47 // pred_region
          %403 = dma.done %s396, 1024
        $region56: #{tpu_custom_call.1} parent=47 // pred_fallthru
          _
        %s404 = sand.u32 %s30, 1
        %s405 = scalar_lea.sflag [#allocation8], %s404
        %s406 = sand.u32 %s136, 1
        %s407 = smul.addr %s406, 64
        %s408 = scalar_lea.vmem [#allocation9], %s407
        // Predicated region
        $region57: #{tpu_custom_call.1} parent=47 // pred_check
          %p409 = pneg %p149
        $region58: #{tpu_custom_call.1} parent=47 // pred_check_branch
          %411 = sbr.rel (%p409) target = $region60
        $region59: #{tpu_custom_call.1} parent=47 // pred_region
          %412 = dma.done %s405, 1024
        $region60: #{tpu_custom_call.1} parent=47 // pred_fallthru
          _
        %s413 = sand.u32 %s188, 1
        %s414 = scalar_lea.sflag [#allocation11], %s413
        %s415 = sand.u32 %s188, 1
        %s416 = smul.addr %s415, 64
        %s417 = scalar_lea.vmem [#allocation10], %s416
        // Predicated region
        $region61: #{tpu_custom_call.1} parent=47 // pred_check
          %p418 = pneg %p201
        $region62: #{tpu_custom_call.1} parent=47 // pred_check_branch
          %420 = sbr.rel (%p418) target = $region64
        $region63: #{tpu_custom_call.1} parent=47 // pred_region
          %421 = dma.done %s414, 1024
        $region64: #{tpu_custom_call.1} parent=47 // pred_fallthru
          _
        %s422 = sand.u32 %s54, 1
        %s423 = scalar_lea.sflag [#allocation5], %s422
        %s424 = sand.u32 %s54, 1
        %s425 = smul.addr %s424, 64
        %s426 = scalar_lea.vmem [#allocation4], %s425
        %p427 = pneg %p67
        %p428 = pneg %p64
        %s429 = sand.u32 %s30, 1
        %s430 = scalar_lea.sflag [#allocation8], %s429
        %s431 = sand.u32 %s84, 1
        %s432 = smul.addr %s431, 64
        %s433 = scalar_lea.vmem [#allocation7], %s432
        %p434 = pneg %p97
        %p435 = pneg %p94
        %p436 = scmp.lt.s32.totalorder %s35, 0
        %s437 = scalar_select %p436, %s35, 0
        %s438 = smul.addr %s437, 4
        %s439 = scalar_lea.vmem %s2, %s438
        %p440 = pneg %p123
        %p441 = pneg %p120
        %s442 = sand.u32 %s30, 1
        %s443 = scalar_lea.sflag [#allocation8], %s442
        %s444 = sand.u32 %s136, 1
        %s445 = smul.addr %s444, 64
        %s446 = scalar_lea.vmem [#allocation9], %s445
        %p447 = pneg %p149
        %p448 = pneg %p146
        %p449 = scmp.lt.s32.totalorder %s34, 2
        %s450 = scalar_select %p449, %s34, 2
        %s451 = scalar_lea.vmem %s4, %s450
        %p452 = pneg %p175
        %p453 = pneg %p172
        %s454 = sand.u32 %s188, 1
        %s455 = scalar_lea.sflag [#allocation11], %s454
        %s456 = sand.u32 %s188, 1
        %s457 = smul.addr %s456, 64
        %s458 = scalar_lea.vmem [#allocation10], %s457
        %p459 = pneg %p201
        %p460 = pneg %p198
        %p461 = scmp.lt.s32.totalorder %s34, 2
        %s462 = scalar_select %p461, %s34, 2
        %s463 = scalar_lea.vmem %s6, %s462
        %p464 = pneg %p227
        %p465 = pneg %p224
        %p466 = pneg %p253
        %p467 = pneg %p250
        %s468 = sand.u32 %s240, 1
        %s469 = scalar_lea.sflag [#allocation6], %s468
        %s470 = sand.u32 %s240, 1
        %s471 = smul.addr %s470, 8
        %s472 = scalar_lea.vmem [#allocation12], %s471
        %p473 = scmp.eq.s32.totalorder %s34, 0
        %s474 = scalar_select %p473, %s35, 0
        %s475 = smul.u32 16, %s474
        %p476 = scmp.eq.s32.totalorder %s34, 0
        %s477 = scalar_select %p476, 0, %s35
        %s478 = smul.u32 16, %s477
        %p479 = scmp.lt.s32.totalorder %s35, 0
        %s480 = scalar_select %p479, %s35, 0
        %s481 = smul.addr %s480, 4
        %s482 = scalar_lea.vmem %s2, %s481
        %p483 = scmp.lt.s32.totalorder %s34, 2
        %s484 = scalar_select %p483, %s34, 2
        %s485 = scalar_lea.vmem %s4, %s484
        %p486 = scmp.lt.s32.totalorder %s34, 2
        %s487 = scalar_select %p486, %s34, 2
        %s488 = scalar_lea.vmem %s6, %s487
        %p490 = scmp.eq.s32.totalorder %s34, 0
        // Predicated region
        $region65: #{tpu_custom_call.1} parent=47 // pred_check
          %p491 = pneg %p490
        $region66: #{tpu_custom_call.1} parent=47 // pred_check_branch
          %493 = sbr.rel (%p491) target = $region68
        $region67: #{tpu_custom_call.1} parent=47 // pred_region
          %v494 = vld [vmem:[%s390] sm:$0xf]
          %v495 = vld [vmem:[%s390 + $0x4] sm:$0xf]
          %v496 = vld [vmem:[%s390 + $0x8] sm:$0xf]
          %v497 = vld [vmem:[%s390 + $0xc] sm:$0xf]
          %v498 = vld [vmem:[%s390 + $0x10] sm:$0xf]
          %v499 = vld [vmem:[%s390 + $0x14] sm:$0xf]
          %v500 = vld [vmem:[%s390 + $0x18] sm:$0xf]
          %v501 = vld [vmem:[%s390 + $0x1c] sm:$0xf]
          %v502 = vld [vmem:[%s390 + $0x20] sm:$0xf]
          %v503 = vld [vmem:[%s390 + $0x24] sm:$0xf]
          %v504 = vld [vmem:[%s390 + $0x28] sm:$0xf]
          %v505 = vld [vmem:[%s390 + $0x2c] sm:$0xf]
          %v506 = vld [vmem:[%s390 + $0x30] sm:$0xf]
          %v507 = vld [vmem:[%s390 + $0x34] sm:$0xf]
          %v508 = vld [vmem:[%s390 + $0x38] sm:$0xf]
          %v509 = vld [vmem:[%s390 + $0x3c] sm:$0xf]
          %v510 = vunpack.c.l.bf16 %v494
          %v511 = vunpack.c.l.bf16 %v495
          %v512 = vunpack.c.l.bf16 %v496
          %v513 = vunpack.c.l.bf16 %v497
          %v514 = vunpack.c.l.bf16 %v498
          %v515 = vunpack.c.l.bf16 %v499
          %v516 = vunpack.c.l.bf16 %v500
          %v517 = vunpack.c.l.bf16 %v501
          %v518 = vunpack.c.l.bf16 %v502
          %v519 = vunpack.c.l.bf16 %v503
          %v520 = vunpack.c.l.bf16 %v504
          %v521 = vunpack.c.l.bf16 %v505
          %v522 = vunpack.c.l.bf16 %v506
          %v523 = vunpack.c.l.bf16 %v507
          %v524 = vunpack.c.l.bf16 %v508
          %v525 = vunpack.c.l.bf16 %v509
          %526 = vst [vmem:[#allocation3] sm:$0xff] %v510
          %527 = vst [vmem:[#allocation3 + $0x8] sm:$0xff] %v511
          %528 = vst [vmem:[#allocation3 + $0x10] sm:$0xff] %v512
          %529 = vst [vmem:[#allocation3 + $0x18] sm:$0xff] %v513
          %530 = vst [vmem:[#allocation3 + $0x20] sm:$0xff] %v514
          %531 = vst [vmem:[#allocation3 + $0x28] sm:$0xff] %v515
          %532 = vst [vmem:[#allocation3 + $0x30] sm:$0xff] %v516
          %533 = vst [vmem:[#allocation3 + $0x38] sm:$0xff] %v517
          %534 = vst [vmem:[#allocation3 + $0x40] sm:$0xff] %v518
          %535 = vst [vmem:[#allocation3 + $0x48] sm:$0xff] %v519
          %536 = vst [vmem:[#allocation3 + $0x50] sm:$0xff] %v520
          %537 = vst [vmem:[#allocation3 + $0x58] sm:$0xff] %v521
          %538 = vst [vmem:[#allocation3 + $0x60] sm:$0xff] %v522
          %539 = vst [vmem:[#allocation3 + $0x68] sm:$0xff] %v523
          %540 = vst [vmem:[#allocation3 + $0x70] sm:$0xff] %v524
          %541 = vst [vmem:[#allocation3 + $0x78] sm:$0xff] %v525
        $region68: #{tpu_custom_call.1} parent=47 // pred_fallthru
          _
        %p542 = scmp.gt.s32.totalorder %s34, 0
        // Predicated region
        $region69: #{tpu_custom_call.1} parent=47 // pred_check
          %p543 = pneg %p542
        $region70: #{tpu_custom_call.1} parent=47 // pred_check_branch
          %545 = sbr.rel (%p543) target = $region72
        $region71: #{tpu_custom_call.1} parent=47 // pred_region
          %p546 = scmp.lt.s32.totalorder %s34, 0
          %s547 = ssub.s32 0, %s34
          %s548 = scalar_select %p546, %s547, %s34
          %s549 = sand.u32 %s548, 1
          %s550 = ssub.s32 0, %s549
          %s551 = scalar_select %p546, %s550, %s549
          %s552 = ssub.s32 1, %s551
          %s553 = smul.u32 %s552, 128
          %s554 = smul.u32 %s35, 128
          %s555 = sadd.s32 %s553, %s554
          %s556 = sshra.s32 %s553, 4
          %s557 = sand.u32 %s553, 15
          %s558 = smul.addr %s556, 8
          %s559 = scalar_lea.vmem [#allocation2], %s558
          %v560 = vld [vmem:[%s559] sm:$0xff]
          %v561 = vld [vmem:[%s559 + $0x8] sm:$0xff]
          %v562 = vld [vmem:[%s559 + $0x10] sm:$0xff]
          %v563 = vld [vmem:[%s559 + $0x18] sm:$0xff]
          %v564 = vld [vmem:[%s559 + $0x20] sm:$0xff]
          %v565 = vld [vmem:[%s559 + $0x28] sm:$0xff]
          %v566 = vld [vmem:[%s559 + $0x30] sm:$0xff]
          %v567 = vld [vmem:[%s559 + $0x38] sm:$0xff]
          %s568 = sshra.s32 %s555, 4
          %s569 = sand.u32 %s555, 15
          %s570 = smul.addr %s568, 8
          %s571 = scalar_lea.vmem [#allocation2], %s570
          %v572 = vld [vmem:[%s571] sm:$0xff]
          %v573 = vld [vmem:[%s571 + $0x8] sm:$0xff]
          %v574 = vld [vmem:[%s571 + $0x10] sm:$0xff]
          %v575 = vld [vmem:[%s571 + $0x18] sm:$0xff]
          %v576 = vld [vmem:[%s571 + $0x20] sm:$0xff]
          %v577 = vld [vmem:[%s571 + $0x28] sm:$0xff]
          %v578 = vld [vmem:[%s571 + $0x30] sm:$0xff]
          %v579 = vld [vmem:[%s571 + $0x38] sm:$0xff]
          %v580 = vunpack.c.l.bf16 %v572
          %v581 = vunpack.c.h.bf16 %v572
          %v582 = vunpack.c.l.bf16 %v573
          %v583 = vunpack.c.h.bf16 %v573
          %v584 = vunpack.c.l.bf16 %v574
          %v585 = vunpack.c.h.bf16 %v574
          %v586 = vunpack.c.l.bf16 %v575
          %v587 = vunpack.c.h.bf16 %v575
          %v588 = vunpack.c.l.bf16 %v576
          %v589 = vunpack.c.h.bf16 %v576
          %v590 = vunpack.c.l.bf16 %v577
          %v591 = vunpack.c.h.bf16 %v577
          %v592 = vunpack.c.l.bf16 %v578
          %v593 = vunpack.c.h.bf16 %v578
          %v594 = vunpack.c.l.bf16 %v579
          %v595 = vunpack.c.h.bf16 %v579
          %v596 = vld [vmem:[%s399] sm:$0xf]
          %v597 = vld [vmem:[%s399 + $0x4] sm:$0xf]
          %v598 = vld [vmem:[%s399 + $0x8] sm:$0xf]
          %v599 = vld [vmem:[%s399 + $0xc] sm:$0xf]
          %v600 = vld [vmem:[%s399 + $0x10] sm:$0xf]
          %v601 = vld [vmem:[%s399 + $0x14] sm:$0xf]
          %v602 = vld [vmem:[%s399 + $0x18] sm:$0xf]
          %v603 = vld [vmem:[%s399 + $0x1c] sm:$0xf]
          %v604 = vld [vmem:[%s399 + $0x20] sm:$0xf]
          %v605 = vld [vmem:[%s399 + $0x24] sm:$0xf]
          %v606 = vld [vmem:[%s399 + $0x28] sm:$0xf]
          %v607 = vld [vmem:[%s399 + $0x2c] sm:$0xf]
          %v608 = vld [vmem:[%s399 + $0x30] sm:$0xf]
          %v609 = vld [vmem:[%s399 + $0x34] sm:$0xf]
          %v610 = vld [vmem:[%s399 + $0x38] sm:$0xf]
          %v611 = vld [vmem:[%s399 + $0x3c] sm:$0xf]
          %v628 = vunpack.c.l.b16 %v596
          %v629 = vunpack.c.l.b16 %v597
          %v630 = vunpack.c.l.b16 %v598
          %v631 = vunpack.c.l.b16 %v599
          %v632 = vunpack.c.l.b16 %v600
          %v633 = vunpack.c.l.b16 %v601
          %v634 = vunpack.c.l.b16 %v602
          %v635 = vunpack.c.l.b16 %v603
          %v636 = vunpack.c.l.b16 %v604
          %v637 = vunpack.c.l.b16 %v605
          %v638 = vunpack.c.l.b16 %v606
          %v639 = vunpack.c.l.b16 %v607
          %v640 = vunpack.c.l.b16 %v608
          %v641 = vunpack.c.l.b16 %v609
          %v642 = vunpack.c.l.b16 %v610
          %v643 = vunpack.c.l.b16 %v611
          %v644 = vpack.c.b16 %v629, %v628
          %v645 = vpack.c.b16 %v631, %v630
          %v646 = vpack.c.b16 %v633, %v632
          %v647 = vpack.c.b16 %v635, %v634
          %v648 = vpack.c.b16 %v637, %v636
          %v649 = vpack.c.b16 %v639, %v638
          %v650 = vpack.c.b16 %v641, %v640
          %v651 = vpack.c.b16 %v643, %v642
          %660 = vmatprep.subr.bf16.mxu0 0
          %661 = vmatpush1.bf16.msra.mxu0 %v560
          %662 = vmatprep.subr.bf16.mxu0 0
          %663 = vmatpush1.bf16.msra.mxu0 %v561
          %664 = vmatprep.subr.bf16.mxu0 0
          %665 = vmatpush1.bf16.msra.mxu0 %v562
          %666 = vmatprep.subr.bf16.mxu0 0
          %667 = vmatpush1.bf16.msra.mxu0 %v563
          %668 = vmatprep.subr.bf16.mxu0 0
          %669 = vmatpush1.bf16.msra.mxu0 %v564
          %670 = vmatprep.subr.bf16.mxu0 0
          %671 = vmatpush1.bf16.msra.mxu0 %v565
          %672 = vmatprep.subr.bf16.mxu0 0
          %673 = vmatpush1.bf16.msra.mxu0 %v566
          %674 = vmatprep.subr.bf16.mxu0 0
          %675 = vmatpush1.bf16.msra.mxu0 %v567
          %676 = vmatprep.subr.bf16.mxu0 0
          %677 = vmatpush1.bf16.msra.mxu0 0
          %678 = vmatprep.subr.bf16.mxu0 0
          %679 = vmatpush1.bf16.msra.mxu0 0
          %680 = vmatprep.subr.bf16.mxu0 0
          %681 = vmatpush1.bf16.msra.mxu0 0
          %682 = vmatprep.subr.bf16.mxu0 0
          %683 = vmatpush1.bf16.msra.mxu0 0
          %684 = vmatprep.subr.bf16.mxu0 0
          %685 = vmatpush1.bf16.msra.mxu0 0
          %686 = vmatprep.subr.bf16.mxu0 0
          %687 = vmatpush1.bf16.msra.mxu0 0
          %688 = vmatprep.subr.bf16.mxu0 0
          %689 = vmatpush1.bf16.msra.mxu0 0
          %690 = vmatprep.subr.bf16.mxu0 0
          %691 = vmatpush1.bf16.msra.mxu0 0
          %692 = vmatprep.mubr.bf16.mxu0 0
          %693 = vmatmul.mubr.bf16.gmra.mrb[0].mxu0 %v644
          %v694 = vpop.f32.mrb[0].mxu0
          %v695 = vadd.f32 0.0, %v694
          %v696 = vpop.f32.mrb[0].mxu0
          %v697 = vpop.f32.mrb[0].mxu0
          %v698 = vadd.f32 0.0, %v697
          %v699 = vpop.f32.mrb[0].mxu0
          %700 = vmatprep.mubr.bf16.mxu0 0
          %701 = vmatmul.mubr.bf16.gmra.mrb[0].mxu0 %v645
          %v702 = vpop.f32.mrb[0].mxu0
          %v703 = vadd.f32 0.0, %v702
          %v704 = vpop.f32.mrb[0].mxu0
          %v705 = vpop.f32.mrb[0].mxu0
          %v706 = vadd.f32 0.0, %v705
          %v707 = vpop.f32.mrb[0].mxu0
          %708 = vmatprep.mubr.bf16.mxu0 0
          %709 = vmatmul.mubr.bf16.gmra.mrb[0].mxu0 %v646
          %v710 = vpop.f32.mrb[0].mxu0
          %v711 = vadd.f32 0.0, %v710
          %v712 = vpop.f32.mrb[0].mxu0
          %v713 = vpop.f32.mrb[0].mxu0
          %v714 = vadd.f32 0.0, %v713
          %v715 = vpop.f32.mrb[0].mxu0
          %716 = vmatprep.mubr.bf16.mxu0 0
          %717 = vmatmul.mubr.bf16.gmra.mrb[0].mxu0 %v647
          %v718 = vpop.f32.mrb[0].mxu0
          %v719 = vadd.f32 0.0, %v718
          %v720 = vpop.f32.mrb[0].mxu0
          %v721 = vpop.f32.mrb[0].mxu0
          %v722 = vadd.f32 0.0, %v721
          %v723 = vpop.f32.mrb[0].mxu0
          %724 = vmatprep.mubr.bf16.mxu0 0
          %725 = vmatmul.mubr.bf16.gmra.mrb[0].mxu0 %v648
          %v726 = vpop.f32.mrb[0].mxu0
          %v727 = vadd.f32 0.0, %v726
          %v728 = vpop.f32.mrb[0].mxu0
          %v729 = vpop.f32.mrb[0].mxu0
          %v730 = vadd.f32 0.0, %v729
          %v731 = vpop.f32.mrb[0].mxu0
          %732 = vmatprep.mubr.bf16.mxu0 0
          %733 = vmatmul.mubr.bf16.gmra.mrb[0].mxu0 %v649
          %v734 = vpop.f32.mrb[0].mxu0
          %v735 = vadd.f32 0.0, %v734
          %v736 = vpop.f32.mrb[0].mxu0
          %v737 = vpop.f32.mrb[0].mxu0
          %v738 = vadd.f32 0.0, %v737
          %v739 = vpop.f32.mrb[0].mxu0
          %740 = vmatprep.mubr.bf16.mxu0 0
          %741 = vmatmul.mubr.bf16.gmra.mrb[0].mxu0 %v650
          %v742 = vpop.f32.mrb[0].mxu0
          %v743 = vadd.f32 0.0, %v742
          %v744 = vpop.f32.mrb[0].mxu0
          %v745 = vpop.f32.mrb[0].mxu0
          %v746 = vadd.f32 0.0, %v745
          %v747 = vpop.f32.mrb[0].mxu0
          %748 = vmatprep.mubr.bf16.mxu0 0
          %749 = vmatmul.mubr.bf16.gmra.mrb[0].mxu0 %v651
          %v750 = vpop.f32.mrb[0].mxu0
          %v751 = vadd.f32 0.0, %v750
          %v752 = vpop.f32.mrb[0].mxu0
          %v753 = vpop.f32.mrb[0].mxu0
          %v754 = vadd.f32 0.0, %v753
          %v755 = vpop.f32.mrb[0].mxu0
          %756 = vdwg.mxu0
          %v757 = vadd.f32 %v580, %v695
          %v758 = vadd.f32 %v581, %v698
          %v759 = vadd.f32 %v582, %v703
          %v760 = vadd.f32 %v583, %v706
          %v761 = vadd.f32 %v584, %v711
          %v762 = vadd.f32 %v585, %v714
          %v763 = vadd.f32 %v586, %v719
          %v764 = vadd.f32 %v587, %v722
          %v765 = vadd.f32 %v588, %v727
          %v766 = vadd.f32 %v589, %v730
          %v767 = vadd.f32 %v590, %v735
          %v768 = vadd.f32 %v591, %v738
          %v769 = vadd.f32 %v592, %v743
          %v770 = vadd.f32 %v593, %v746
          %v771 = vadd.f32 %v594, %v751
          %v772 = vadd.f32 %v595, %v754
          %773 = vst [vmem:[#allocation3] sm:$0xff] %v757
          %774 = vst [vmem:[#allocation3 + $0x8] sm:$0xff] %v758
          %775 = vst [vmem:[#allocation3 + $0x10] sm:$0xff] %v759
          %776 = vst [vmem:[#allocation3 + $0x18] sm:$0xff] %v760
          %777 = vst [vmem:[#allocation3 + $0x20] sm:$0xff] %v761
          %778 = vst [vmem:[#allocation3 + $0x28] sm:$0xff] %v762
          %779 = vst [vmem:[#allocation3 + $0x30] sm:$0xff] %v763
          %780 = vst [vmem:[#allocation3 + $0x38] sm:$0xff] %v764
          %781 = vst [vmem:[#allocation3 + $0x40] sm:$0xff] %v765
          %782 = vst [vmem:[#allocation3 + $0x48] sm:$0xff] %v766
          %783 = vst [vmem:[#allocation3 + $0x50] sm:$0xff] %v767
          %784 = vst [vmem:[#allocation3 + $0x58] sm:$0xff] %v768
          %785 = vst [vmem:[#allocation3 + $0x60] sm:$0xff] %v769
          %786 = vst [vmem:[#allocation3 + $0x68] sm:$0xff] %v770
          %787 = vst [vmem:[#allocation3 + $0x70] sm:$0xff] %v771
          %788 = vst [vmem:[#allocation3 + $0x78] sm:$0xff] %v772
        $region72: #{tpu_custom_call.1} parent=47 // pred_fallthru
          _
        %v789 = vld [vmem:[#allocation3] sm:$0xff]
        %v790 = vld [vmem:[#allocation3 + $0x8] sm:$0xff]
        %v791 = vld [vmem:[#allocation3 + $0x10] sm:$0xff]
        %v792 = vld [vmem:[#allocation3 + $0x18] sm:$0xff]
        %v793 = vld [vmem:[#allocation3 + $0x20] sm:$0xff]
        %v794 = vld [vmem:[#allocation3 + $0x28] sm:$0xff]
        %v795 = vld [vmem:[#allocation3 + $0x30] sm:$0xff]
        %v796 = vld [vmem:[#allocation3 + $0x38] sm:$0xff]
        %v797 = vld [vmem:[#allocation3 + $0x40] sm:$0xff]
        %v798 = vld [vmem:[#allocation3 + $0x48] sm:$0xff]
        %v799 = vld [vmem:[#allocation3 + $0x50] sm:$0xff]
        %v800 = vld [vmem:[#allocation3 + $0x58] sm:$0xff]
        %v801 = vld [vmem:[#allocation3 + $0x60] sm:$0xff]
        %v802 = vld [vmem:[#allocation3 + $0x68] sm:$0xff]
        %v803 = vld [vmem:[#allocation3 + $0x70] sm:$0xff]
        %v804 = vld [vmem:[#allocation3 + $0x78] sm:$0xff]
        %v805 = vpack.c.bf16 %v790, %v789
        %v806 = vpack.c.bf16 %v792, %v791
        %v807 = vpack.c.bf16 %v794, %v793
        %v808 = vpack.c.bf16 %v796, %v795
        %v809 = vpack.c.bf16 %v798, %v797
        %v810 = vpack.c.bf16 %v800, %v799
        %v811 = vpack.c.bf16 %v802, %v801
        %v812 = vpack.c.bf16 %v804, %v803
        %v813 = vld [vmem:[%s408] sm:$0xf]
        %v814 = vld [vmem:[%s408 + $0x4] sm:$0xf]
        %v815 = vld [vmem:[%s408 + $0x8] sm:$0xf]
        %v816 = vld [vmem:[%s408 + $0xc] sm:$0xf]
        %v817 = vld [vmem:[%s408 + $0x10] sm:$0xf]
        %v818 = vld [vmem:[%s408 + $0x14] sm:$0xf]
        %v819 = vld [vmem:[%s408 + $0x18] sm:$0xf]
        %v820 = vld [vmem:[%s408 + $0x1c] sm:$0xf]
        %v821 = vld [vmem:[%s408 + $0x20] sm:$0xf]
        %v822 = vld [vmem:[%s408 + $0x24] sm:$0xf]
        %v823 = vld [vmem:[%s408 + $0x28] sm:$0xf]
        %v824 = vld [vmem:[%s408 + $0x2c] sm:$0xf]
        %v825 = vld [vmem:[%s408 + $0x30] sm:$0xf]
        %v826 = vld [vmem:[%s408 + $0x34] sm:$0xf]
        %v827 = vld [vmem:[%s408 + $0x38] sm:$0xf]
        %v828 = vld [vmem:[%s408 + $0x3c] sm:$0xf]
        %v829 = vld [vmem:[%s485] sm:$0x1]
        %v831 = vlaneseq
        %v832 = vshrl.u32 %v831, 7
        %v833 = vsub.s32 0, %v832
        %v834 = vrot.slane %v829, %v833
        %v852 = vunpack.c.l.b16 %v813
        %v853 = vunpack.c.l.b16 %v814
        %v854 = vunpack.c.l.b16 %v815
        %v855 = vunpack.c.l.b16 %v816
        %v856 = vunpack.c.l.b16 %v817
        %v857 = vunpack.c.l.b16 %v818
        %v858 = vunpack.c.l.b16 %v819
        %v859 = vunpack.c.l.b16 %v820
        %v860 = vunpack.c.l.b16 %v821
        %v861 = vunpack.c.l.b16 %v822
        %v862 = vunpack.c.l.b16 %v823
        %v863 = vunpack.c.l.b16 %v824
        %v864 = vunpack.c.l.b16 %v825
        %v865 = vunpack.c.l.b16 %v826
        %v866 = vunpack.c.l.b16 %v827
        %v867 = vunpack.c.l.b16 %v828
        %v868 = vpack.c.b16 %v853, %v852
        %v869 = vpack.c.b16 %v855, %v854
        %v870 = vpack.c.b16 %v857, %v856
        %v871 = vpack.c.b16 %v859, %v858
        %v872 = vpack.c.b16 %v861, %v860
        %v873 = vpack.c.b16 %v863, %v862
        %v874 = vpack.c.b16 %v865, %v864
        %v875 = vpack.c.b16 %v867, %v866
        %884 = vmatprep.subr.bf16.mxu0 0
        %885 = vmatpush1.bf16.msra.mxu0 %v868
        %886 = vmatprep.subr.bf16.mxu0 0
        %887 = vmatpush1.bf16.msra.mxu0 %v869
        %888 = vmatprep.subr.bf16.mxu0 0
        %889 = vmatpush1.bf16.msra.mxu0 %v870
        %890 = vmatprep.subr.bf16.mxu0 0
        %891 = vmatpush1.bf16.msra.mxu0 %v871
        %892 = vmatprep.subr.bf16.mxu0 0
        %893 = vmatpush1.bf16.msra.mxu0 %v872
        %894 = vmatprep.subr.bf16.mxu0 0
        %895 = vmatpush1.bf16.msra.mxu0 %v873
        %896 = vmatprep.subr.bf16.mxu0 0
        %897 = vmatpush1.bf16.msra.mxu0 %v874
        %898 = vmatprep.subr.bf16.mxu0 0
        %899 = vmatpush1.bf16.msra.mxu0 %v875
        %900 = vmatprep.subr.bf16.mxu0 0
        %901 = vmatpush1.bf16.msra.mxu0 0
        %902 = vmatprep.subr.bf16.mxu0 0
        %903 = vmatpush1.bf16.msra.mxu0 0
        %904 = vmatprep.subr.bf16.mxu0 0
        %905 = vmatpush1.bf16.msra.mxu0 0
        %906 = vmatprep.subr.bf16.mxu0 0
        %907 = vmatpush1.bf16.msra.mxu0 0
        %908 = vmatprep.subr.bf16.mxu0 0
        %909 = vmatpush1.bf16.msra.mxu0 0
        %910 = vmatprep.subr.bf16.mxu0 0
        %911 = vmatpush1.bf16.msra.mxu0 0
        %912 = vmatprep.subr.bf16.mxu0 0
        %913 = vmatpush1.bf16.msra.mxu0 0
        %914 = vmatprep.subr.bf16.mxu0 0
        %915 = vmatpush1.bf16.msra.mxu0 0
        %916 = vmatprep.mubr.bf16.mxu0 0
        %917 = vmatmul.mubr.bf16.gmra.mrb[0].mxu0 %v805
        %v918 = vpop.f32.mrb[0].mxu0
        %v919 = vadd.f32 %v834, %v918
        %v920 = vpop.f32.mrb[0].mxu0
        %v921 = vpop.f32.mrb[0].mxu0
        %v922 = vadd.f32 %v834, %v921
        %v923 = vpop.f32.mrb[0].mxu0
        %924 = vmatprep.mubr.bf16.mxu0 0
        %925 = vmatmul.mubr.bf16.gmra.mrb[0].mxu0 %v806
        %v926 = vpop.f32.mrb[0].mxu0
        %v927 = vadd.f32 %v834, %v926
        %v928 = vpop.f32.mrb[0].mxu0
        %v929 = vpop.f32.mrb[0].mxu0
        %v930 = vadd.f32 %v834, %v929
        %v931 = vpop.f32.mrb[0].mxu0
        %932 = vmatprep.mubr.bf16.mxu0 0
        %933 = vmatmul.mubr.bf16.gmra.mrb[0].mxu0 %v807
        %v934 = vpop.f32.mrb[0].mxu0
        %v935 = vadd.f32 %v834, %v934
        %v936 = vpop.f32.mrb[0].mxu0
        %v937 = vpop.f32.mrb[0].mxu0
        %v938 = vadd.f32 %v834, %v937
        %v939 = vpop.f32.mrb[0].mxu0
        %940 = vmatprep.mubr.bf16.mxu0 0
        %941 = vmatmul.mubr.bf16.gmra.mrb[0].mxu0 %v808
        %v942 = vpop.f32.mrb[0].mxu0
        %v943 = vadd.f32 %v834, %v942
        %v944 = vpop.f32.mrb[0].mxu0
        %v945 = vpop.f32.mrb[0].mxu0
        %v946 = vadd.f32 %v834, %v945
        %v947 = vpop.f32.mrb[0].mxu0
        %948 = vmatprep.mubr.bf16.mxu0 0
        %949 = vmatmul.mubr.bf16.gmra.mrb[0].mxu0 %v809
        %v950 = vpop.f32.mrb[0].mxu0
        %v951 = vadd.f32 %v834, %v950
        %v952 = vpop.f32.mrb[0].mxu0
        %v953 = vpop.f32.mrb[0].mxu0
        %v954 = vadd.f32 %v834, %v953
        %v955 = vpop.f32.mrb[0].mxu0
        %956 = vmatprep.mubr.bf16.mxu0 0
        %957 = vmatmul.mubr.bf16.gmra.mrb[0].mxu0 %v810
        %v958 = vpop.f32.mrb[0].mxu0
        %v959 = vadd.f32 %v834, %v958
        %v960 = vpop.f32.mrb[0].mxu0
        %v961 = vpop.f32.mrb[0].mxu0
        %v962 = vadd.f32 %v834, %v961
        %v963 = vpop.f32.mrb[0].mxu0
        %964 = vmatprep.mubr.bf16.mxu0 0
        %965 = vmatmul.mubr.bf16.gmra.mrb[0].mxu0 %v811
        %v966 = vpop.f32.mrb[0].mxu0
        %v967 = vadd.f32 %v834, %v966
        %v968 = vpop.f32.mrb[0].mxu0
        %v969 = vpop.f32.mrb[0].mxu0
        %v970 = vadd.f32 %v834, %v969
        %v971 = vpop.f32.mrb[0].mxu0
        %972 = vmatprep.mubr.bf16.mxu0 0
        %973 = vmatmul.mubr.bf16.gmra.mrb[0].mxu0 %v812
        %v974 = vpop.f32.mrb[0].mxu0
        %v975 = vadd.f32 %v834, %v974
        %v976 = vpop.f32.mrb[0].mxu0
        %v977 = vpop.f32.mrb[0].mxu0
        %v978 = vadd.f32 %v834, %v977
        %v979 = vpop.f32.mrb[0].mxu0
        %980 = vdwg.mxu0
        %v981 = vmax.f32 %v919, 0.0
        %v982 = vmax.f32 %v922, 0.0
        %v983 = vmax.f32 %v927, 0.0
        %v984 = vmax.f32 %v930, 0.0
        %v985 = vmax.f32 %v935, 0.0
        %v986 = vmax.f32 %v938, 0.0
        %v987 = vmax.f32 %v943, 0.0
        %v988 = vmax.f32 %v946, 0.0
        %v989 = vmax.f32 %v951, 0.0
        %v990 = vmax.f32 %v954, 0.0
        %v991 = vmax.f32 %v959, 0.0
        %v992 = vmax.f32 %v962, 0.0
        %v993 = vmax.f32 %v967, 0.0
        %v994 = vmax.f32 %v970, 0.0
        %v995 = vmax.f32 %v975, 0.0
        %v996 = vmax.f32 %v978, 0.0
        %v997 = vpack.c.bf16 %v982, %v981
        %v998 = vpack.c.bf16 %v984, %v983
        %v999 = vpack.c.bf16 %v986, %v985
        %v1000 = vpack.c.bf16 %v988, %v987
        %v1001 = vpack.c.bf16 %v990, %v989
        %v1002 = vpack.c.bf16 %v992, %v991
        %v1003 = vpack.c.bf16 %v994, %v993
        %v1004 = vpack.c.bf16 %v996, %v995
        %v1005 = vld [vmem:[%s417] sm:$0xf]
        %v1006 = vld [vmem:[%s417 + $0x4] sm:$0xf]
        %v1007 = vld [vmem:[%s417 + $0x8] sm:$0xf]
        %v1008 = vld [vmem:[%s417 + $0xc] sm:$0xf]
        %v1009 = vld [vmem:[%s417 + $0x10] sm:$0xf]
        %v1010 = vld [vmem:[%s417 + $0x14] sm:$0xf]
        %v1011 = vld [vmem:[%s417 + $0x18] sm:$0xf]
        %v1012 = vld [vmem:[%s417 + $0x1c] sm:$0xf]
        %v1013 = vld [vmem:[%s417 + $0x20] sm:$0xf]
        %v1014 = vld [vmem:[%s417 + $0x24] sm:$0xf]
        %v1015 = vld [vmem:[%s417 + $0x28] sm:$0xf]
        %v1016 = vld [vmem:[%s417 + $0x2c] sm:$0xf]
        %v1017 = vld [vmem:[%s417 + $0x30] sm:$0xf]
        %v1018 = vld [vmem:[%s417 + $0x34] sm:$0xf]
        %v1019 = vld [vmem:[%s417 + $0x38] sm:$0xf]
        %v1020 = vld [vmem:[%s417 + $0x3c] sm:$0xf]
        %v1021 = vld [vmem:[%s488] sm:$0x1]
        %v1023 = vlaneseq
        %v1024 = vshrl.u32 %v1023, 7
        %v1025 = vsub.s32 0, %v1024
        %v1026 = vrot.slane %v1021, %v1025
        %v1044 = vunpack.c.l.b16 %v1005
        %v1045 = vunpack.c.l.b16 %v1006
        %v1046 = vunpack.c.l.b16 %v1007
        %v1047 = vunpack.c.l.b16 %v1008
        %v1048 = vunpack.c.l.b16 %v1009
        %v1049 = vunpack.c.l.b16 %v1010
        %v1050 = vunpack.c.l.b16 %v1011
        %v1051 = vunpack.c.l.b16 %v1012
        %v1052 = vunpack.c.l.b16 %v1013
        %v1053 = vunpack.c.l.b16 %v1014
        %v1054 = vunpack.c.l.b16 %v1015
        %v1055 = vunpack.c.l.b16 %v1016
        %v1056 = vunpack.c.l.b16 %v1017
        %v1057 = vunpack.c.l.b16 %v1018
        %v1058 = vunpack.c.l.b16 %v1019
        %v1059 = vunpack.c.l.b16 %v1020
        %v1060 = vpack.c.b16 %v1045, %v1044
        %v1061 = vpack.c.b16 %v1047, %v1046
        %v1062 = vpack.c.b16 %v1049, %v1048
        %v1063 = vpack.c.b16 %v1051, %v1050
        %v1064 = vpack.c.b16 %v1053, %v1052
        %v1065 = vpack.c.b16 %v1055, %v1054
        %v1066 = vpack.c.b16 %v1057, %v1056
        %v1067 = vpack.c.b16 %v1059, %v1058
        %1076 = vmatprep.subr.bf16.mxu0 0
        %1077 = vmatpush1.bf16.msra.mxu0 %v1060
        %1078 = vmatprep.subr.bf16.mxu0 0
        %1079 = vmatpush1.bf16.msra.mxu0 %v1061
        %1080 = vmatprep.subr.bf16.mxu0 0
        %1081 = vmatpush1.bf16.msra.mxu0 %v1062
        %1082 = vmatprep.subr.bf16.mxu0 0
        %1083 = vmatpush1.bf16.msra.mxu0 %v1063
        %1084 = vmatprep.subr.bf16.mxu0 0
        %1085 = vmatpush1.bf16.msra.mxu0 %v1064
        %1086 = vmatprep.subr.bf16.mxu0 0
        %1087 = vmatpush1.bf16.msra.mxu0 %v1065
        %1088 = vmatprep.subr.bf16.mxu0 0
        %1089 = vmatpush1.bf16.msra.mxu0 %v1066
        %1090 = vmatprep.subr.bf16.mxu0 0
        %1091 = vmatpush1.bf16.msra.mxu0 %v1067
        %1092 = vmatprep.subr.bf16.mxu0 0
        %1093 = vmatpush1.bf16.msra.mxu0 0
        %1094 = vmatprep.subr.bf16.mxu0 0
        %1095 = vmatpush1.bf16.msra.mxu0 0
        %1096 = vmatprep.subr.bf16.mxu0 0
        %1097 = vmatpush1.bf16.msra.mxu0 0
        %1098 = vmatprep.subr.bf16.mxu0 0
        %1099 = vmatpush1.bf16.msra.mxu0 0
        %1100 = vmatprep.subr.bf16.mxu0 0
        %1101 = vmatpush1.bf16.msra.mxu0 0
        %1102 = vmatprep.subr.bf16.mxu0 0
        %1103 = vmatpush1.bf16.msra.mxu0 0
        %1104 = vmatprep.subr.bf16.mxu0 0
        %1105 = vmatpush1.bf16.msra.mxu0 0
        %1106 = vmatprep.subr.bf16.mxu0 0
        %1107 = vmatpush1.bf16.msra.mxu0 0
        %1108 = vmatprep.mubr.bf16.mxu0 0
        %1109 = vmatmul.mubr.bf16.gmra.mrb[0].mxu0 %v997
        %v1110 = vpop.f32.mrb[0].mxu0
        %v1111 = vadd.f32 %v1026, %v1110
        %v1112 = vpop.f32.mrb[0].mxu0
        %v1113 = vpop.f32.mrb[0].mxu0
        %v1114 = vadd.f32 %v1026, %v1113
        %v1115 = vpop.f32.mrb[0].mxu0
        %1116 = vmatprep.mubr.bf16.mxu0 0
        %1117 = vmatmul.mubr.bf16.gmra.mrb[0].mxu0 %v998
        %v1118 = vpop.f32.mrb[0].mxu0
        %v1119 = vadd.f32 %v1026, %v1118
        %v1120 = vpop.f32.mrb[0].mxu0
        %v1121 = vpop.f32.mrb[0].mxu0
        %v1122 = vadd.f32 %v1026, %v1121
        %v1123 = vpop.f32.mrb[0].mxu0
        %1124 = vmatprep.mubr.bf16.mxu0 0
        %1125 = vmatmul.mubr.bf16.gmra.mrb[0].mxu0 %v999
        %v1126 = vpop.f32.mrb[0].mxu0
        %v1127 = vadd.f32 %v1026, %v1126
        %v1128 = vpop.f32.mrb[0].mxu0
        %v1129 = vpop.f32.mrb[0].mxu0
        %v1130 = vadd.f32 %v1026, %v1129
        %v1131 = vpop.f32.mrb[0].mxu0
        %1132 = vmatprep.mubr.bf16.mxu0 0
        %1133 = vmatmul.mubr.bf16.gmra.mrb[0].mxu0 %v1000
        %v1134 = vpop.f32.mrb[0].mxu0
        %v1135 = vadd.f32 %v1026, %v1134
        %v1136 = vpop.f32.mrb[0].mxu0
        %v1137 = vpop.f32.mrb[0].mxu0
        %v1138 = vadd.f32 %v1026, %v1137
        %v1139 = vpop.f32.mrb[0].mxu0
        %1140 = vmatprep.mubr.bf16.mxu0 0
        %1141 = vmatmul.mubr.bf16.gmra.mrb[0].mxu0 %v1001
        %v1142 = vpop.f32.mrb[0].mxu0
        %v1143 = vadd.f32 %v1026, %v1142
        %v1144 = vpop.f32.mrb[0].mxu0
        %v1145 = vpop.f32.mrb[0].mxu0
        %v1146 = vadd.f32 %v1026, %v1145
        %v1147 = vpop.f32.mrb[0].mxu0
        %1148 = vmatprep.mubr.bf16.mxu0 0
        %1149 = vmatmul.mubr.bf16.gmra.mrb[0].mxu0 %v1002
        %v1150 = vpop.f32.mrb[0].mxu0
        %v1151 = vadd.f32 %v1026, %v1150
        %v1152 = vpop.f32.mrb[0].mxu0
        %v1153 = vpop.f32.mrb[0].mxu0
        %v1154 = vadd.f32 %v1026, %v1153
        %v1155 = vpop.f32.mrb[0].mxu0
        %1156 = vmatprep.mubr.bf16.mxu0 0
        %1157 = vmatmul.mubr.bf16.gmra.mrb[0].mxu0 %v1003
        %v1158 = vpop.f32.mrb[0].mxu0
        %v1159 = vadd.f32 %v1026, %v1158
        %v1160 = vpop.f32.mrb[0].mxu0
        %v1161 = vpop.f32.mrb[0].mxu0
        %v1162 = vadd.f32 %v1026, %v1161
        %v1163 = vpop.f32.mrb[0].mxu0
        %1164 = vmatprep.mubr.bf16.mxu0 0
        %1165 = vmatmul.mubr.bf16.gmra.mrb[0].mxu0 %v1004
        %v1166 = vpop.f32.mrb[0].mxu0
        %v1167 = vadd.f32 %v1026, %v1166
        %v1168 = vpop.f32.mrb[0].mxu0
        %v1169 = vpop.f32.mrb[0].mxu0
        %v1170 = vadd.f32 %v1026, %v1169
        %v1171 = vpop.f32.mrb[0].mxu0
        %1172 = vdwg.mxu0
        %v1173 = vmax.f32 %v1111, 0.0
        %v1174 = vmax.f32 %v1114, 0.0
        %v1175 = vmax.f32 %v1119, 0.0
        %v1176 = vmax.f32 %v1122, 0.0
        %v1177 = vmax.f32 %v1127, 0.0
        %v1178 = vmax.f32 %v1130, 0.0
        %v1179 = vmax.f32 %v1135, 0.0
        %v1180 = vmax.f32 %v1138, 0.0
        %v1181 = vmax.f32 %v1143, 0.0
        %v1182 = vmax.f32 %v1146, 0.0
        %v1183 = vmax.f32 %v1151, 0.0
        %v1184 = vmax.f32 %v1154, 0.0
        %v1185 = vmax.f32 %v1159, 0.0
        %v1186 = vmax.f32 %v1162, 0.0
        %v1187 = vmax.f32 %v1167, 0.0
        %v1188 = vmax.f32 %v1170, 0.0
        %v1189 = vpack.c.bf16 %v1174, %v1173
        %v1190 = vpack.c.bf16 %v1176, %v1175
        %v1191 = vpack.c.bf16 %v1178, %v1177
        %v1192 = vpack.c.bf16 %v1180, %v1179
        %v1193 = vpack.c.bf16 %v1182, %v1181
        %v1194 = vpack.c.bf16 %v1184, %v1183
        %v1195 = vpack.c.bf16 %v1186, %v1185
        %v1196 = vpack.c.bf16 %v1188, %v1187
        %p1197 = scmp.lt.s32.totalorder %s34, 2
        // Predicated region
        $region73: #{tpu_custom_call.1} parent=47 // pred_check
          %p1198 = pneg %p1197
        $region74: #{tpu_custom_call.1} parent=47 // pred_check_branch
          %1200 = sbr.rel (%p1198) target = $region76
        $region75: #{tpu_custom_call.1} parent=47 // pred_region
          %p1201 = scmp.lt.s32.totalorder %s34, 0
          %s1202 = ssub.s32 0, %s34
          %s1203 = scalar_select %p1201, %s1202, %s34
          %s1204 = sand.u32 %s1203, 1
          %s1205 = ssub.s32 0, %s1204
          %s1206 = scalar_select %p1201, %s1205, %s1204
          %s1207 = smul.u32 %s1206, 128
          %s1208 = smul.u32 %s35, 128
          %s1209 = sadd.s32 %s1207, %s1208
          %s1210 = sshra.s32 %s1209, 4
          %s1211 = sand.u32 %s1209, 15
          %s1212 = smul.addr %s1210, 8
          %s1213 = scalar_lea.vmem [#allocation2], %s1212
          %1214 = vst [vmem:[%s1213] sm:$0xff] %v1189
          %1215 = vst [vmem:[%s1213 + $0x8] sm:$0xff] %v1190
          %1216 = vst [vmem:[%s1213 + $0x10] sm:$0xff] %v1191
          %1217 = vst [vmem:[%s1213 + $0x18] sm:$0xff] %v1192
          %1218 = vst [vmem:[%s1213 + $0x20] sm:$0xff] %v1193
          %1219 = vst [vmem:[%s1213 + $0x28] sm:$0xff] %v1194
          %1220 = vst [vmem:[%s1213 + $0x30] sm:$0xff] %v1195
          %1221 = vst [vmem:[%s1213 + $0x38] sm:$0xff] %v1196
        $region76: #{tpu_custom_call.1} parent=47 // pred_fallthru
          _
        %v1222 = vld [vmem:[%s482] sm:$0xf]
        %1223 = vmatprep.subr.bf16.mxu0 0
        %1224 = vmatpush1.bf16.msra.mxu0 %v1189
        %1225 = vmatprep.subr.bf16.mxu0 0
        %1226 = vmatpush1.bf16.msra.mxu0 %v1190
        %1227 = vmatprep.subr.bf16.mxu0 0
        %1228 = vmatpush1.bf16.msra.mxu0 %v1191
        %1229 = vmatprep.subr.bf16.mxu0 0
        %1230 = vmatpush1.bf16.msra.mxu0 %v1192
        %1231 = vmatprep.subr.bf16.mxu0 0
        %1232 = vmatpush1.bf16.msra.mxu0 %v1193
        %1233 = vmatprep.subr.bf16.mxu0 0
        %1234 = vmatpush1.bf16.msra.mxu0 %v1194
        %1235 = vmatprep.subr.bf16.mxu0 0
        %1236 = vmatpush1.bf16.msra.mxu0 %v1195
        %1237 = vmatprep.subr.bf16.mxu0 0
        %1238 = vmatpush1.bf16.msra.mxu0 %v1196
        %1239 = vmatprep.subr.bf16.mxu0 0
        %1240 = vmatpush1.bf16.msra.mxu0 0
        %1241 = vmatprep.subr.bf16.mxu0 0
        %1242 = vmatpush1.bf16.msra.mxu0 0
        %1243 = vmatprep.subr.bf16.mxu0 0
        %1244 = vmatpush1.bf16.msra.mxu0 0
        %1245 = vmatprep.subr.bf16.mxu0 0
        %1246 = vmatpush1.bf16.msra.mxu0 0
        %1247 = vmatprep.subr.bf16.mxu0 0
        %1248 = vmatpush1.bf16.msra.mxu0 0
        %1249 = vmatprep.subr.bf16.mxu0 0
        %1250 = vmatpush1.bf16.msra.mxu0 0
        %1251 = vmatprep.subr.bf16.mxu0 0
        %1252 = vmatpush1.bf16.msra.mxu0 0
        %1253 = vmatprep.subr.bf16.mxu0 0
        %1254 = vmatpush1.bf16.msra.mxu0 0
        %1255 = vmatprep.mubr.bf16.mxu0 0
        %1256 = vmatmul.mubr.bf16.gmra.mrb[0].mxu0 %v1222
        %v1257 = vpop.f32.mrb[0].mxu0
        %v1258 = vadd.f32 0.0, %v1257
        %v1259 = vpop.f32.mrb[0].mxu0
        %v1260 = vpop.f32.mrb[0].mxu0
        %v1261 = vpop.f32.mrb[0].mxu0
        %1262 = vdwg.mxu0
        %p1263 = scmp.eq.s32.totalorder %s35, 0
        // Predicated region
        $region77: #{tpu_custom_call.1} parent=47 // pred_check
          %p1264 = pneg %p1263
        $region78: #{tpu_custom_call.1} parent=47 // pred_check_branch
          %1266 = sbr.rel (%p1264) target = $region80
        $region79: #{tpu_custom_call.1} parent=47 // pred_region
          %1267 = vst [vmem:[%s472] sm:$0xff] %v1258
        $region80: #{tpu_custom_call.1} parent=47 // pred_fallthru
          _
        %p1268 = scmp.gt.s32.totalorder %s35, 0
        // Predicated region
        $region81: #{tpu_custom_call.1} parent=47 // pred_check
          %p1269 = pneg %p1268
        $region82: #{tpu_custom_call.1} parent=47 // pred_check_branch
          %1271 = sbr.rel (%p1269) target = $region84
        $region83: #{tpu_custom_call.1} parent=47 // pred_region
          %v1272 = vld [vmem:[%s472] sm:$0xff]
          %v1273 = vadd.f32 %v1272, %v1258
          %1274 = vst [vmem:[%s472] sm:$0xff] %v1273
        $region84: #{tpu_custom_call.1} parent=47 // pred_fallthru
          _
        %s1275 = sand.u32 %s240, 1
        %s1276 = scalar_lea.sflag [#allocation6], %s1275
        %s1277 = sand.u32 %s240, 1
        %s1278 = smul.addr %s1277, 8
        %s1279 = scalar_lea.vmem [#allocation12], %s1278
        // Predicated region
        $region85: #{tpu_custom_call.1} parent=47 // pred_check
          %p1280 = pneg %p250
        $region86: #{tpu_custom_call.1} parent=47 // pred_check_branch
          %1282 = sbr.rel (%p1280) target = $region88
        $region87: #{tpu_custom_call.1} parent=47 // pred_region
          %s1284 = ssub.s32 128, 128
          %1285 = vsyncadd %s1276, %s1284
          %s1286 = smul.addr %s34, 128
          %s1287 = scalar_lea.hbm %s7, %s1286
          %s1289 = sshll.u32 %s1279, 4
          %s1290 = int_to_ptr.vmem [resolvable:$true] %s1289
          %1292 = dma.vmem_to_hbm [thread:$0]  %s1290, 128, %s1287, %s1276
        $region88: #{tpu_custom_call.1} parent=47 // pred_fallthru
          _
      $region48: #{tpu_custom_call.1} parent=5 // pred_fallthru
        _
      %p1293 = scmp.le.s32.totalorder 2, %s25
      // Predicated region
      $region89: #{tpu_custom_call.1} parent=5 // pred_check
        %p1294 = pneg %p1293
      $region90: #{tpu_custom_call.1} parent=5 // pred_check_branch
        %1296 = sbr.rel (%p1294) target = $region92
      $region91: #{tpu_custom_call.1} parent=5 // pred_region
        %s1297 = ssub.s32 %s25, 2
        // Predicated region
        $region93: #{tpu_custom_call.1} parent=91 // pred_check
          %p1298 = pneg %p256
        $region94: #{tpu_custom_call.1} parent=91 // pred_check_branch
          %1300 = sbr.rel (%p1298) target = $region96
        $region95: #{tpu_custom_call.1} parent=91 // pred_region
          %s1301 = sand.u32 %s241, 1
          %s1302 = scalar_lea.sflag [#allocation6], %s1301
          %s1303 = sand.u32 %s241, 1
          %s1304 = smul.addr %s1303, 8
          %s1305 = scalar_lea.vmem [#allocation12], %s1304
          %1306 = dma.done %s1302, 128
        $region96: #{tpu_custom_call.1} parent=91 // pred_fallthru
          _
      $region92: #{tpu_custom_call.1} parent=5 // pred_fallthru
        _
    $region6: #{tpu_custom_call.1} parent=1 // loop_footer
      %s29 = sadd.s32 1, %s25
    $region7: #{tpu_custom_call.1} parent=1 // loop_footer_branch
      %24 = sbr.rel target = $region3
    $region8: #{tpu_custom_call.1} parent=1 // loop_exit
      _
    %1307 = vsyncpa [#allocation5], 1
    %s1308 = scalar_lea.sflag [#allocation5], 1
    %1309 = vsyncpa %s1308, 1
    %1310 = vsyncpa [#allocation8], 1
    %s1311 = scalar_lea.sflag [#allocation8], 1
    %1312 = vsyncpa %s1311, 1
    %1313 = vsyncpa [#allocation11], 1
    %s1314 = scalar_lea.sflag [#allocation11], 1
    %1315 = vsyncpa %s1314, 1
    %1316 = vsyncpa [#allocation6], 1
    %s1317 = scalar_lea.sflag [#allocation6], 1
    %1318 = vsyncpa %s1317, 1

</llo_original>
